<compile_context>
chip_gen: v5e
topology: v5e:2x2
jax: 0.10.0
libtpu: 0.0.40
codegen_flags: <defaults>
</compile_context>

<pallas_src>
import math
from functools import partial

import jax
import jax.numpy as jnp
from jax.experimental import pallas as pl
from jax.experimental.pallas import tpu as pltpu  # noqa: F401 (kept for parity)


# ----------------------------------------------------------------------------
# Fused encoder + mean-pooling kernel
# ----------------------------------------------------------------------------
def _encoder_kernel(emb_ref, mask_col_ref, bias_ref,
                    emb_g_ref, emb_b_ref,
                    wqkv_ref, bqkv_ref, wo_ref, bo_ref,
                    ln1_g_ref, ln1_b_ref,
                    w1_ref, b1_ref, w2_ref, b2_ref,
                    ln2_g_ref, ln2_b_ref,
                    out_ref,
                    *, B, S, H, nH, dh, L, eps):
    f32 = jnp.float32
    bf16 = jnp.bfloat16
    BH = B * nH                       # flattened (head-major) attention batch

    def ln(x, g, b):
        mu = jnp.mean(x, axis=-1, keepdims=True)
        var = jnp.mean(jnp.square(x - mu), axis=-1, keepdims=True)
        return (x - mu) * jax.lax.rsqrt(var + eps) * g + b

    def mm(x_f32, w_bf16):
        # Activation cast exactly once; weights arrive pre-cast bf16 from the
        # wrapper.  MXU feed bf16, accumulation f32.
        return jnp.dot(x_f32.astype(bf16), w_bf16, preferred_element_type=f32)

    # Embedding LayerNorm.
    h = ln(emb_ref[...], emb_g_ref[...], emb_b_ref[...])          # (B*S, H) f32

    # Hoist the additive softmax bias once for the whole kernel:
    # (B*nH, 1, S) -> (B*nH, S, S), head-major flattened batch axis.
    bias_full = jnp.broadcast_to(bias_ref[...], (BH, S, S))

    def split_heads(qkv, base):
        # Take the H columns starting at `base`, split per head, stack heads on
        # the leading batch axis (index = head*B + b).  Leading-dim reshapes
        # only (sublane-tile aligned: S == 8).
        parts = [qkv[:, base + hd * dh: base + (hd + 1) * dh]
                 .reshape(B, S, dh).astype(bf16) for hd in range(nH)]
        return jnp.concatenate(parts, axis=0)                     # (B*nH, S, dh)

    # Both transformer layers unrolled, everything VMEM-resident.
    for l in range(L):
        # --- self-attention, fully batched over (batch, head) ---------------
        qkv = mm(h, wqkv_ref[l]) + bqkv_ref[l]                    # (B*S, 3H) f32
        q3 = split_heads(qkv, 0)                                  # scale pre-folded
        k3 = split_heads(qkv, H)
        v3 = split_heads(qkv, 2 * H)

        s = jnp.einsum('bqd,bkd->bqk', q3, k3,
                       preferred_element_type=f32) + bias_full    # (BH, S, S)
        s = s - jnp.max(s, axis=-1, keepdims=True)
        p = jnp.exp(s)
        p = p * pl.reciprocal(jnp.sum(p, axis=-1, keepdims=True), approx=True)

        ctx3 = jnp.einsum('bqk,bkd->bqd', p.astype(bf16), v3,
                          preferred_element_type=f32)             # (BH, S, dh)
        # Merge heads back to (B*S, H) (head-major columns, matching wo rows).
        ctx = jnp.concatenate(
            [ctx3[hd * B:(hd + 1) * B].reshape(B * S, dh) for hd in range(nH)],
            axis=-1)                                              # (B*S, H)

        attn = mm(ctx, wo_ref[l]) + bo_ref[l]                     # one output proj
        h = ln(h + attn, ln1_g_ref[l], ln1_b_ref[l])

        # --- FFN -------------------------------------------------------------
        ffn = mm(h, w1_ref[l]) + b1_ref[l]
        # TODO(synk): HF BERT uses exact erf GELU; tanh approximation used here.
        ffn = jax.nn.gelu(ffn, approximate=True)
        ffn = mm(ffn, w2_ref[l]) + b2_ref[l]
        h = ln(h + ffn, ln2_g_ref[l], ln2_b_ref[l])

    # --- masked mean pooling, single shot, single store -----------------------
    mask_col = mask_col_ref[...]                                  # (B*S, 1)
    masked = (h * mask_col).reshape(B, S, H)
    sums = jnp.sum(masked, axis=1)                                # (B, H)
    denom = jnp.maximum(jnp.sum(mask_col.reshape(B, S, 1), axis=1), 1e-9)
    out_ref[...] = sums / denom                                   # exact div, one store


# ----------------------------------------------------------------------------
# Parameter init (deterministic, synthetic — replaces AutoModel.from_pretrained)
# ----------------------------------------------------------------------------
CFG = dict(vocab=100, max_pos=16, type_vocab=2, hidden=32, heads=2,
           head_dim=16, ffn=64, layers=2)


def init_params(key, cfg):
    H, F, L = cfg["hidden"], cfg["ffn"], cfg["layers"]

    def nrm(k, shape):
        return 0.02 * jax.random.normal(k, shape, jnp.float32)

    keys = jax.random.split(key, 7)
    return {
        "word_emb": nrm(keys[0], (cfg["vocab"], H)),
        "pos_emb": nrm(keys[1], (cfg["max_pos"], H)),
        "type_emb": nrm(keys[2], (cfg["type_vocab"], H)),
        "emb_ln_g": jnp.ones((1, H), jnp.float32),
        "emb_ln_b": jnp.zeros((1, H), jnp.float32),
        # Per-layer weights stacked on a leading layer axis; Q/K/V concatenated
        # ([Q | K | V], each block head-major within its H columns).
        "wqkv": nrm(keys[3], (L, H, 3 * H)),
        "bqkv": jnp.zeros((L, 1, 3 * H), jnp.float32),
        "wo": nrm(keys[4], (L, H, H)),
        "bo": jnp.zeros((L, 1, H), jnp.float32),
        "ln1_g": jnp.ones((L, 1, H), jnp.float32),
        "ln1_b": jnp.zeros((L, 1, H), jnp.float32),
        "w1": nrm(keys[5], (L, H, F)),
        "b1": jnp.zeros((L, 1, F), jnp.float32),
        "w2": nrm(keys[6], (L, F, H)),
        "b2": jnp.zeros((L, 1, H), jnp.float32),
        "ln2_g": jnp.ones((L, 1, H), jnp.float32),
        "ln2_b": jnp.zeros((L, 1, H), jnp.float32),
    }


# ----------------------------------------------------------------------------
# Forward: encoder(input_ids, attn_masks)[0] -> MeanPooling
# ----------------------------------------------------------------------------
def bert_embedder_forward(params, input_ids, attn_masks, cfg):
    B, S = input_ids.shape
    H, nH, dh = cfg["hidden"], cfg["heads"], cfg["head_dim"]
    F, L = cfg["ffn"], cfg["layers"]
    assert nH * dh == H
    bf16 = jnp.bfloat16

    # Embedding gathers (data-dependent lookups) stay in plain JAX.
    word = jnp.take(params["word_emb"], input_ids, axis=0)        # (B, S, H)
    pos = params["pos_emb"][:S][None, :, :]                       # (1, S, H)
    tok = params["type_emb"][0][None, None, :]                    # token_type_ids = 0
    emb = (word + pos + tok).reshape(B * S, H).astype(jnp.float32)

    mask_f = attn_masks.astype(jnp.float32)                       # (B, S)
    mask_col = mask_f.reshape(B * S, 1)
    # Additive softmax bias, pre-tiled to the kernel's head-major (B*nH, 1, S)
    # batch layout (index = head*B + b  ->  batch b).
    mask_bias = jnp.tile(((1.0 - mask_f) * -1e9).reshape(B, 1, S), (nH, 1, 1))

    # Fold 1/sqrt(dh) into the Q columns of the fused QKV weight AND its bias.
    scale = 1.0 / math.sqrt(dh)
    col_scale = jnp.concatenate(
        [jnp.full((H,), scale, jnp.float32), jnp.ones((2 * H,), jnp.float32)])
    wqkv = (params["wqkv"] * col_scale).astype(bf16)
    bqkv = params["bqkv"] * col_scale

    # Rough cost hint so XLA overlaps the surrounding gather/adds.
    flops = 2 * L * ((B * S) * (3 * H * H + H * H + 2 * H * F)
                     + 2 * B * nH * S * S * dh)
    transc = L * (B * nH * S * S + B * nH * S + B * S * F) + (2 * L + 1) * B * S + B
    bytes_acc = (2 * L * (3 * H * H + H * H + 2 * H * F)            # bf16 weights
                 + 4 * L * (4 * H + 3 * H + F + 2 * H)               # f32 bias/LN
                 + 4 * (B * S * H + B * S + nH * B * S + B * H))     # act/mask/out
    cost = pl.CostEstimate(flops=flops, transcendentals=transc,
                           bytes_accessed=bytes_acc)

    kernel = partial(_encoder_kernel, B=B, S=S, H=H, nH=nH, dh=dh, L=L, eps=1e-12)

    return pl.pallas_call(
        kernel,
        out_shape=jax.ShapeDtypeStruct((B, H), jnp.float32),
        cost_estimate=cost,
    )(emb, mask_col, mask_bias,
      params["emb_ln_g"], params["emb_ln_b"],
      wqkv, bqkv,
      params["wo"].astype(bf16), params["bo"],
      params["ln1_g"], params["ln1_b"],
      params["w1"].astype(bf16), params["b1"],
      params["w2"].astype(bf16), params["b2"],
      params["ln2_g"], params["ln2_b"])


# ----------------------------------------------------------------------------
if __name__ == "__main__":
    B, S = 2, 8
    key = jax.random.PRNGKey(0)
    k_param, k_ids = jax.random.split(key)

    params = init_params(k_param, CFG)
    input_ids = jax.random.randint(k_ids, (B, S), 0, CFG["vocab"], dtype=jnp.int32)
    # attention masks: second sequence has padding on the last 3 tokens
    attn_masks = jnp.array([[1, 1, 1, 1, 1, 1, 1, 1],
                            [1, 1, 1, 1, 1, 0, 0, 0]], dtype=jnp.int32)

    fwd = jax.jit(lambda p, ids, m: bert_embedder_forward(p, ids, m, CFG))
    out = fwd(params, input_ids, attn_masks)
    out = jax.block_until_ready(out)
    assert out.shape == (B, CFG["hidden"])
    assert bool(jnp.all(jnp.isfinite(out)))
    print("KERNEL_OK")
</pallas_src>

<mosaic_0001>
module attributes {stable_mosaic.version = 11 : i64} {
  func.func @_encoder_kernel(%arg0: memref<16x32xf32, #tpu.memory_space<vmem>>, %arg1: memref<16x1xf32, #tpu.memory_space<vmem>>, %arg2: memref<4x1x8xf32, #tpu.memory_space<vmem>>, %arg3: memref<1x32xf32, #tpu.memory_space<vmem>>, %arg4: memref<1x32xf32, #tpu.memory_space<vmem>>, %arg5: memref<2x32x96xbf16, #tpu.memory_space<vmem>>, %arg6: memref<2x1x96xf32, #tpu.memory_space<vmem>>, %arg7: memref<2x32x32xbf16, #tpu.memory_space<vmem>>, %arg8: memref<2x1x32xf32, #tpu.memory_space<vmem>>, %arg9: memref<2x1x32xf32, #tpu.memory_space<vmem>>, %arg10: memref<2x1x32xf32, #tpu.memory_space<vmem>>, %arg11: memref<2x32x64xbf16, #tpu.memory_space<vmem>>, %arg12: memref<2x1x64xf32, #tpu.memory_space<vmem>>, %arg13: memref<2x64x32xbf16, #tpu.memory_space<vmem>>, %arg14: memref<2x1x32xf32, #tpu.memory_space<vmem>>, %arg15: memref<2x1x32xf32, #tpu.memory_space<vmem>>, %arg16: memref<2x1x32xf32, #tpu.memory_space<vmem>>, %arg17: memref<2x32xf32, #tpu.memory_space<vmem>>) attributes {dimension_semantics = [], scalar_prefetch = 0 : i64, scratch_operands = 0 : i64, tpu.core_type = #tpu.core_type<tc>} {
    %c0 = arith.constant 0 : index
    %c0_0 = arith.constant 0 : index
    %0 = vector.load %arg0[%c0, %c0_0] : memref<16x32xf32, #tpu.memory_space<vmem>>, vector<16x32xf32>
    %c0_1 = arith.constant 0 : index
    %c0_2 = arith.constant 0 : index
    %1 = vector.load %arg3[%c0_1, %c0_2] : memref<1x32xf32, #tpu.memory_space<vmem>>, vector<1x32xf32>
    %c0_3 = arith.constant 0 : index
    %c0_4 = arith.constant 0 : index
    %2 = vector.load %arg4[%c0_3, %c0_4] : memref<1x32xf32, #tpu.memory_space<vmem>>, vector<1x32xf32>
    %cst = arith.constant dense<0.000000e+00> : vector<16xf32>
    %3 = vector.multi_reduction <add>, %0, %cst [1] : vector<16x32xf32> to vector<16xf32>
    %4 = vector.shape_cast %3 : vector<16xf32> to vector<16x1xf32>
    %cst_5 = arith.constant 3.200000e+01 : f32
    %5 = vector.broadcast %cst_5 : f32 to vector<16x1xf32>
    %6 = arith.divf %4, %5 : vector<16x1xf32>
    %7 = vector.broadcast %6 : vector<16x1xf32> to vector<16x32xf32>
    %8 = arith.subf %0, %7 : vector<16x32xf32>
    %9 = arith.mulf %8, %8 : vector<16x32xf32>
    %cst_6 = arith.constant dense<0.000000e+00> : vector<16xf32>
    %10 = vector.multi_reduction <add>, %9, %cst_6 [1] : vector<16x32xf32> to vector<16xf32>
    %11 = vector.shape_cast %10 : vector<16xf32> to vector<16x1xf32>
    %cst_7 = arith.constant 3.200000e+01 : f32
    %12 = vector.broadcast %cst_7 : f32 to vector<16x1xf32>
    %13 = arith.divf %11, %12 : vector<16x1xf32>
    %14 = vector.broadcast %6 : vector<16x1xf32> to vector<16x32xf32>
    %15 = arith.subf %0, %14 : vector<16x32xf32>
    %cst_8 = arith.constant 9.99999996E-13 : f32
    %16 = vector.broadcast %cst_8 : f32 to vector<16x1xf32>
    %17 = arith.addf %13, %16 : vector<16x1xf32>
    %18 = math.rsqrt %17 : vector<16x1xf32>
    %19 = vector.broadcast %18 : vector<16x1xf32> to vector<16x32xf32>
    %20 = arith.mulf %15, %19 : vector<16x32xf32>
    %21 = vector.broadcast %1 : vector<1x32xf32> to vector<16x32xf32>
    %22 = arith.mulf %20, %21 : vector<16x32xf32>
    %23 = vector.broadcast %2 : vector<1x32xf32> to vector<16x32xf32>
    %24 = arith.addf %22, %23 : vector<16x32xf32>
    %c0_9 = arith.constant 0 : index
    %c0_10 = arith.constant 0 : index
    %c0_11 = arith.constant 0 : index
    %25 = vector.load %arg2[%c0_9, %c0_10, %c0_11] : memref<4x1x8xf32, #tpu.memory_space<vmem>>, vector<4x1x8xf32>
    %26 = vector.shape_cast %25 : vector<4x1x8xf32> to vector<4x1x8xf32>
    %27 = vector.broadcast %26 : vector<4x1x8xf32> to vector<4x8x8xf32>
    %c0_12 = arith.constant 0 : index
    %c0_13 = arith.constant 0 : index
    %c0_14 = arith.constant 0 : index
    %28 = vector.load %arg5[%c0_12, %c0_13, %c0_14] : memref<2x32x96xbf16, #tpu.memory_space<vmem>>, vector<1x32x96xbf16>
    %29 = vector.shape_cast %28 : vector<1x32x96xbf16> to vector<32x96xbf16>
    %30 = arith.truncf %24 : vector<16x32xf32> to vector<16x32xbf16>
    %cst_15 = arith.constant dense<0.000000e+00> : vector<16x96xf32>
    %31 = tpu.matmul %30, %29, %cst_15 {dimension_numbers = #tpu.dot_dimension_numbers<[1], [0], [0], [1], [0, 0, 1, 1], [], []>} : vector<16x32xbf16>, vector<32x96xbf16>, vector<16x96xf32> -> vector<16x96xf32>
    %c0_16 = arith.constant 0 : index
    %c0_17 = arith.constant 0 : index
    %c0_18 = arith.constant 0 : index
    %32 = vector.load %arg6[%c0_16, %c0_17, %c0_18] : memref<2x1x96xf32, #tpu.memory_space<vmem>>, vector<1x1x96xf32>
    %33 = vector.shape_cast %32 : vector<1x1x96xf32> to vector<1x96xf32>
    %34 = vector.broadcast %33 : vector<1x96xf32> to vector<16x96xf32>
    %35 = arith.addf %31, %34 : vector<16x96xf32>
    %36 = vector.extract_strided_slice %35 {offsets = [0, 0], sizes = [16, 16], strides = [1, 1]} : vector<16x96xf32> to vector<16x16xf32>
    %37 = vector.shape_cast %36 : vector<16x16xf32> to vector<2x8x16xf32>
    %38 = arith.truncf %37 : vector<2x8x16xf32> to vector<2x8x16xbf16>
    %39 = vector.extract_strided_slice %35 {offsets = [0, 16], sizes = [16, 16], strides = [1, 1]} : vector<16x96xf32> to vector<16x16xf32>
    %40 = vector.shape_cast %39 : vector<16x16xf32> to vector<2x8x16xf32>
    %41 = arith.truncf %40 : vector<2x8x16xf32> to vector<2x8x16xbf16>
    %42 = tpu.concatenate %38, %41 in 0 : vector<2x8x16xbf16>, vector<2x8x16xbf16> -> vector<4x8x16xbf16>
    %43 = vector.extract_strided_slice %35 {offsets = [0, 32], sizes = [16, 16], strides = [1, 1]} : vector<16x96xf32> to vector<16x16xf32>
    %44 = vector.shape_cast %43 : vector<16x16xf32> to vector<2x8x16xf32>
    %45 = arith.truncf %44 : vector<2x8x16xf32> to vector<2x8x16xbf16>
    %46 = vector.extract_strided_slice %35 {offsets = [0, 48], sizes = [16, 16], strides = [1, 1]} : vector<16x96xf32> to vector<16x16xf32>
    %47 = vector.shape_cast %46 : vector<16x16xf32> to vector<2x8x16xf32>
    %48 = arith.truncf %47 : vector<2x8x16xf32> to vector<2x8x16xbf16>
    %49 = tpu.concatenate %45, %48 in 0 : vector<2x8x16xbf16>, vector<2x8x16xbf16> -> vector<4x8x16xbf16>
    %50 = vector.extract_strided_slice %35 {offsets = [0, 64], sizes = [16, 16], strides = [1, 1]} : vector<16x96xf32> to vector<16x16xf32>
    %51 = vector.shape_cast %50 : vector<16x16xf32> to vector<2x8x16xf32>
    %52 = arith.truncf %51 : vector<2x8x16xf32> to vector<2x8x16xbf16>
    %53 = vector.extract_strided_slice %35 {offsets = [0, 80], sizes = [16, 16], strides = [1, 1]} : vector<16x96xf32> to vector<16x16xf32>
    %54 = vector.shape_cast %53 : vector<16x16xf32> to vector<2x8x16xf32>
    %55 = arith.truncf %54 : vector<2x8x16xf32> to vector<2x8x16xbf16>
    %56 = tpu.concatenate %52, %55 in 0 : vector<2x8x16xbf16>, vector<2x8x16xbf16> -> vector<4x8x16xbf16>
    "tpu.trace_start"() <{level = 10 : i32, message = "bqd,bkd->bqk"}> : () -> ()
    %cst_19 = arith.constant dense<0.000000e+00> : vector<4x8x8xf32>
    %57 = tpu.matmul %42, %49, %cst_19 {dimension_numbers = #tpu.dot_dimension_numbers<[2], [2], [1], [1], [0, 0, 0, 1, 1, 1], [0], [0]>} : vector<4x8x16xbf16>, vector<4x8x16xbf16>, vector<4x8x8xf32> -> vector<4x8x8xf32>
    "tpu.trace_stop"() : () -> ()
    %58 = arith.addf %57, %27 : vector<4x8x8xf32>
    %cst_20 = arith.constant dense<0xFF800000> : vector<4x8xf32>
    %59 = vector.multi_reduction <maximumf>, %58, %cst_20 [2] : vector<4x8x8xf32> to vector<4x8xf32>
    %60 = vector.shape_cast %59 : vector<4x8xf32> to vector<4x8x1xf32>
    %61 = vector.broadcast %60 : vector<4x8x1xf32> to vector<4x8x8xf32>
    %62 = arith.subf %58, %61 : vector<4x8x8xf32>
    %63 = math.exp %62 : vector<4x8x8xf32>
    %cst_21 = arith.constant dense<0.000000e+00> : vector<4x8xf32>
    %64 = vector.multi_reduction <add>, %63, %cst_21 [2] : vector<4x8x8xf32> to vector<4x8xf32>
    %65 = vector.shape_cast %64 : vector<4x8xf32> to vector<4x8x1xf32>
    %66 = tpu.reciprocal %65 {approx = true} : vector<4x8x1xf32> -> vector<4x8x1xf32>
    %67 = vector.broadcast %66 : vector<4x8x1xf32> to vector<4x8x8xf32>
    %68 = arith.mulf %63, %67 : vector<4x8x8xf32>
    %69 = arith.truncf %68 : vector<4x8x8xf32> to vector<4x8x8xbf16>
    "tpu.trace_start"() <{level = 10 : i32, message = "bqk,bkd->bqd"}> : () -> ()
    %cst_22 = arith.constant dense<0.000000e+00> : vector<4x8x16xf32>
    %70 = tpu.matmul %69, %56, %cst_22 {dimension_numbers = #tpu.dot_dimension_numbers<[2], [1], [1], [2], [0, 0, 0, 1, 1, 2], [0], [0]>} : vector<4x8x8xbf16>, vector<4x8x16xbf16>, vector<4x8x16xf32> -> vector<4x8x16xf32>
    "tpu.trace_stop"() : () -> ()
    %71 = vector.extract_strided_slice %70 {offsets = [0, 0, 0], sizes = [2, 8, 16], strides = [1, 1, 1]} : vector<4x8x16xf32> to vector<2x8x16xf32>
    %72 = vector.shape_cast %71 : vector<2x8x16xf32> to vector<16x16xf32>
    %73 = vector.extract_strided_slice %70 {offsets = [2, 0, 0], sizes = [2, 8, 16], strides = [1, 1, 1]} : vector<4x8x16xf32> to vector<2x8x16xf32>
    %74 = vector.shape_cast %73 : vector<2x8x16xf32> to vector<16x16xf32>
    %75 = tpu.concatenate %72, %74 in 1 : vector<16x16xf32>, vector<16x16xf32> -> vector<16x32xf32>
    %c0_23 = arith.constant 0 : index
    %c0_24 = arith.constant 0 : index
    %c0_25 = arith.constant 0 : index
    %76 = vector.load %arg7[%c0_23, %c0_24, %c0_25] : memref<2x32x32xbf16, #tpu.memory_space<vmem>>, vector<1x32x32xbf16>
    %77 = vector.shape_cast %76 : vector<1x32x32xbf16> to vector<32x32xbf16>
    %78 = arith.truncf %75 : vector<16x32xf32> to vector<16x32xbf16>
    %cst_26 = arith.constant dense<0.000000e+00> : vector<16x32xf32>
    %79 = tpu.matmul %78, %77, %cst_26 {dimension_numbers = #tpu.dot_dimension_numbers<[1], [0], [0], [1], [0, 0, 1, 1], [], []>} : vector<16x32xbf16>, vector<32x32xbf16>, vector<16x32xf32> -> vector<16x32xf32>
    %c0_27 = arith.constant 0 : index
    %c0_28 = arith.constant 0 : index
    %c0_29 = arith.constant 0 : index
    %80 = vector.load %arg8[%c0_27, %c0_28, %c0_29] : memref<2x1x32xf32, #tpu.memory_space<vmem>>, vector<1x1x32xf32>
    %81 = vector.shape_cast %80 : vector<1x1x32xf32> to vector<1x32xf32>
    %82 = vector.broadcast %81 : vector<1x32xf32> to vector<16x32xf32>
    %83 = arith.addf %79, %82 : vector<16x32xf32>
    %84 = arith.addf %24, %83 : vector<16x32xf32>
    %c0_30 = arith.constant 0 : index
    %c0_31 = arith.constant 0 : index
    %c0_32 = arith.constant 0 : index
    %85 = vector.load %arg9[%c0_30, %c0_31, %c0_32] : memref<2x1x32xf32, #tpu.memory_space<vmem>>, vector<1x1x32xf32>
    %86 = vector.shape_cast %85 : vector<1x1x32xf32> to vector<1x32xf32>
    %c0_33 = arith.constant 0 : index
    %c0_34 = arith.constant 0 : index
    %c0_35 = arith.constant 0 : index
    %87 = vector.load %arg10[%c0_33, %c0_34, %c0_35] : memref<2x1x32xf32, #tpu.memory_space<vmem>>, vector<1x1x32xf32>
    %88 = vector.shape_cast %87 : vector<1x1x32xf32> to vector<1x32xf32>
    %cst_36 = arith.constant dense<0.000000e+00> : vector<16xf32>
    %89 = vector.multi_reduction <add>, %84, %cst_36 [1] : vector<16x32xf32> to vector<16xf32>
    %90 = vector.shape_cast %89 : vector<16xf32> to vector<16x1xf32>
    %cst_37 = arith.constant 3.200000e+01 : f32
    %91 = vector.broadcast %cst_37 : f32 to vector<16x1xf32>
    %92 = arith.divf %90, %91 : vector<16x1xf32>
    %93 = vector.broadcast %92 : vector<16x1xf32> to vector<16x32xf32>
    %94 = arith.subf %84, %93 : vector<16x32xf32>
    %95 = arith.mulf %94, %94 : vector<16x32xf32>
    %cst_38 = arith.constant dense<0.000000e+00> : vector<16xf32>
    %96 = vector.multi_reduction <add>, %95, %cst_38 [1] : vector<16x32xf32> to vector<16xf32>
    %97 = vector.shape_cast %96 : vector<16xf32> to vector<16x1xf32>
    %cst_39 = arith.constant 3.200000e+01 : f32
    %98 = vector.broadcast %cst_39 : f32 to vector<16x1xf32>
    %99 = arith.divf %97, %98 : vector<16x1xf32>
    %100 = vector.broadcast %92 : vector<16x1xf32> to vector<16x32xf32>
    %101 = arith.subf %84, %100 : vector<16x32xf32>
    %cst_40 = arith.constant 9.99999996E-13 : f32
    %102 = vector.broadcast %cst_40 : f32 to vector<16x1xf32>
    %103 = arith.addf %99, %102 : vector<16x1xf32>
    %104 = math.rsqrt %103 : vector<16x1xf32>
    %105 = vector.broadcast %104 : vector<16x1xf32> to vector<16x32xf32>
    %106 = arith.mulf %101, %105 : vector<16x32xf32>
    %107 = vector.broadcast %86 : vector<1x32xf32> to vector<16x32xf32>
    %108 = arith.mulf %106, %107 : vector<16x32xf32>
    %109 = vector.broadcast %88 : vector<1x32xf32> to vector<16x32xf32>
    %110 = arith.addf %108, %109 : vector<16x32xf32>
    %c0_41 = arith.constant 0 : index
    %c0_42 = arith.constant 0 : index
    %c0_43 = arith.constant 0 : index
    %111 = vector.load %arg11[%c0_41, %c0_42, %c0_43] : memref<2x32x64xbf16, #tpu.memory_space<vmem>>, vector<1x32x64xbf16>
    %112 = vector.shape_cast %111 : vector<1x32x64xbf16> to vector<32x64xbf16>
    %113 = arith.truncf %110 : vector<16x32xf32> to vector<16x32xbf16>
    %cst_44 = arith.constant dense<0.000000e+00> : vector<16x64xf32>
    %114 = tpu.matmul %113, %112, %cst_44 {dimension_numbers = #tpu.dot_dimension_numbers<[1], [0], [0], [1], [0, 0, 1, 1], [], []>} : vector<16x32xbf16>, vector<32x64xbf16>, vector<16x64xf32> -> vector<16x64xf32>
    %c0_45 = arith.constant 0 : index
    %c0_46 = arith.constant 0 : index
    %c0_47 = arith.constant 0 : index
    %115 = vector.load %arg12[%c0_45, %c0_46, %c0_47] : memref<2x1x64xf32, #tpu.memory_space<vmem>>, vector<1x1x64xf32>
    %116 = vector.shape_cast %115 : vector<1x1x64xf32> to vector<1x64xf32>
    %117 = vector.broadcast %116 : vector<1x64xf32> to vector<16x64xf32>
    %118 = arith.addf %114, %117 : vector<16x64xf32>
    %119 = arith.mulf %118, %118 : vector<16x64xf32>
    %120 = arith.mulf %118, %119 : vector<16x64xf32>
    %cst_48 = arith.constant 4.471500e-02 : f32
    %121 = vector.broadcast %cst_48 : f32 to vector<16x64xf32>
    %122 = arith.mulf %121, %120 : vector<16x64xf32>
    %123 = arith.addf %118, %122 : vector<16x64xf32>
    %cst_49 = arith.constant 0.797884583 : f32
    %124 = vector.broadcast %cst_49 : f32 to vector<16x64xf32>
    %125 = arith.mulf %124, %123 : vector<16x64xf32>
    %126 = math.tanh %125 : vector<16x64xf32>
    %cst_50 = arith.constant 1.000000e+00 : f32
    %127 = vector.broadcast %cst_50 : f32 to vector<16x64xf32>
    %128 = arith.addf %127, %126 : vector<16x64xf32>
    %cst_51 = arith.constant 5.000000e-01 : f32
    %129 = vector.broadcast %cst_51 : f32 to vector<16x64xf32>
    %130 = arith.mulf %129, %128 : vector<16x64xf32>
    %131 = arith.mulf %118, %130 : vector<16x64xf32>
    %c0_52 = arith.constant 0 : index
    %c0_53 = arith.constant 0 : index
    %c0_54 = arith.constant 0 : index
    %132 = vector.load %arg13[%c0_52, %c0_53, %c0_54] : memref<2x64x32xbf16, #tpu.memory_space<vmem>>, vector<1x64x32xbf16>
    %133 = vector.shape_cast %132 : vector<1x64x32xbf16> to vector<64x32xbf16>
    %134 = arith.truncf %131 : vector<16x64xf32> to vector<16x64xbf16>
    %cst_55 = arith.constant dense<0.000000e+00> : vector<16x32xf32>
    %135 = tpu.matmul %134, %133, %cst_55 {dimension_numbers = #tpu.dot_dimension_numbers<[1], [0], [0], [1], [0, 0, 1, 1], [], []>} : vector<16x64xbf16>, vector<64x32xbf16>, vector<16x32xf32> -> vector<16x32xf32>
    %c0_56 = arith.constant 0 : index
    %c0_57 = arith.constant 0 : index
    %c0_58 = arith.constant 0 : index
    %136 = vector.load %arg14[%c0_56, %c0_57, %c0_58] : memref<2x1x32xf32, #tpu.memory_space<vmem>>, vector<1x1x32xf32>
    %137 = vector.shape_cast %136 : vector<1x1x32xf32> to vector<1x32xf32>
    %138 = vector.broadcast %137 : vector<1x32xf32> to vector<16x32xf32>
    %139 = arith.addf %135, %138 : vector<16x32xf32>
    %140 = arith.addf %110, %139 : vector<16x32xf32>
    %c0_59 = arith.constant 0 : index
    %c0_60 = arith.constant 0 : index
    %c0_61 = arith.constant 0 : index
    %141 = vector.load %arg15[%c0_59, %c0_60, %c0_61] : memref<2x1x32xf32, #tpu.memory_space<vmem>>, vector<1x1x32xf32>
    %142 = vector.shape_cast %141 : vector<1x1x32xf32> to vector<1x32xf32>
    %c0_62 = arith.constant 0 : index
    %c0_63 = arith.constant 0 : index
    %c0_64 = arith.constant 0 : index
    %143 = vector.load %arg16[%c0_62, %c0_63, %c0_64] : memref<2x1x32xf32, #tpu.memory_space<vmem>>, vector<1x1x32xf32>
    %144 = vector.shape_cast %143 : vector<1x1x32xf32> to vector<1x32xf32>
    %cst_65 = arith.constant dense<0.000000e+00> : vector<16xf32>
    %145 = vector.multi_reduction <add>, %140, %cst_65 [1] : vector<16x32xf32> to vector<16xf32>
    %146 = vector.shape_cast %145 : vector<16xf32> to vector<16x1xf32>
    %cst_66 = arith.constant 3.200000e+01 : f32
    %147 = vector.broadcast %cst_66 : f32 to vector<16x1xf32>
    %148 = arith.divf %146, %147 : vector<16x1xf32>
    %149 = vector.broadcast %148 : vector<16x1xf32> to vector<16x32xf32>
    %150 = arith.subf %140, %149 : vector<16x32xf32>
    %151 = arith.mulf %150, %150 : vector<16x32xf32>
    %cst_67 = arith.constant dense<0.000000e+00> : vector<16xf32>
    %152 = vector.multi_reduction <add>, %151, %cst_67 [1] : vector<16x32xf32> to vector<16xf32>
    %153 = vector.shape_cast %152 : vector<16xf32> to vector<16x1xf32>
    %cst_68 = arith.constant 3.200000e+01 : f32
    %154 = vector.broadcast %cst_68 : f32 to vector<16x1xf32>
    %155 = arith.divf %153, %154 : vector<16x1xf32>
    %156 = vector.broadcast %148 : vector<16x1xf32> to vector<16x32xf32>
    %157 = arith.subf %140, %156 : vector<16x32xf32>
    %cst_69 = arith.constant 9.99999996E-13 : f32
    %158 = vector.broadcast %cst_69 : f32 to vector<16x1xf32>
    %159 = arith.addf %155, %158 : vector<16x1xf32>
    %160 = math.rsqrt %159 : vector<16x1xf32>
    %161 = vector.broadcast %160 : vector<16x1xf32> to vector<16x32xf32>
    %162 = arith.mulf %157, %161 : vector<16x32xf32>
    %163 = vector.broadcast %142 : vector<1x32xf32> to vector<16x32xf32>
    %164 = arith.mulf %162, %163 : vector<16x32xf32>
    %165 = vector.broadcast %144 : vector<1x32xf32> to vector<16x32xf32>
    %166 = arith.addf %164, %165 : vector<16x32xf32>
    %c1 = arith.constant 1 : index
    %c0_70 = arith.constant 0 : index
    %c0_71 = arith.constant 0 : index
    %167 = vector.load %arg5[%c1, %c0_70, %c0_71] : memref<2x32x96xbf16, #tpu.memory_space<vmem>>, vector<1x32x96xbf16>
    %168 = vector.shape_cast %167 : vector<1x32x96xbf16> to vector<32x96xbf16>
    %169 = arith.truncf %166 : vector<16x32xf32> to vector<16x32xbf16>
    %cst_72 = arith.constant dense<0.000000e+00> : vector<16x96xf32>
    %170 = tpu.matmul %169, %168, %cst_72 {dimension_numbers = #tpu.dot_dimension_numbers<[1], [0], [0], [1], [0, 0, 1, 1], [], []>} : vector<16x32xbf16>, vector<32x96xbf16>, vector<16x96xf32> -> vector<16x96xf32>
    %c1_73 = arith.constant 1 : index
    %c0_74 = arith.constant 0 : index
    %c0_75 = arith.constant 0 : index
    %171 = vector.load %arg6[%c1_73, %c0_74, %c0_75] : memref<2x1x96xf32, #tpu.memory_space<vmem>>, vector<1x1x96xf32>
    %172 = vector.shape_cast %171 : vector<1x1x96xf32> to vector<1x96xf32>
    %173 = vector.broadcast %172 : vector<1x96xf32> to vector<16x96xf32>
    %174 = arith.addf %170, %173 : vector<16x96xf32>
    %175 = vector.extract_strided_slice %174 {offsets = [0, 0], sizes = [16, 16], strides = [1, 1]} : vector<16x96xf32> to vector<16x16xf32>
    %176 = vector.shape_cast %175 : vector<16x16xf32> to vector<2x8x16xf32>
    %177 = arith.truncf %176 : vector<2x8x16xf32> to vector<2x8x16xbf16>
    %178 = vector.extract_strided_slice %174 {offsets = [0, 16], sizes = [16, 16], strides = [1, 1]} : vector<16x96xf32> to vector<16x16xf32>
    %179 = vector.shape_cast %178 : vector<16x16xf32> to vector<2x8x16xf32>
    %180 = arith.truncf %179 : vector<2x8x16xf32> to vector<2x8x16xbf16>
    %181 = tpu.concatenate %177, %180 in 0 : vector<2x8x16xbf16>, vector<2x8x16xbf16> -> vector<4x8x16xbf16>
    %182 = vector.extract_strided_slice %174 {offsets = [0, 32], sizes = [16, 16], strides = [1, 1]} : vector<16x96xf32> to vector<16x16xf32>
    %183 = vector.shape_cast %182 : vector<16x16xf32> to vector<2x8x16xf32>
    %184 = arith.truncf %183 : vector<2x8x16xf32> to vector<2x8x16xbf16>
    %185 = vector.extract_strided_slice %174 {offsets = [0, 48], sizes = [16, 16], strides = [1, 1]} : vector<16x96xf32> to vector<16x16xf32>
    %186 = vector.shape_cast %185 : vector<16x16xf32> to vector<2x8x16xf32>
    %187 = arith.truncf %186 : vector<2x8x16xf32> to vector<2x8x16xbf16>
    %188 = tpu.concatenate %184, %187 in 0 : vector<2x8x16xbf16>, vector<2x8x16xbf16> -> vector<4x8x16xbf16>
    %189 = vector.extract_strided_slice %174 {offsets = [0, 64], sizes = [16, 16], strides = [1, 1]} : vector<16x96xf32> to vector<16x16xf32>
    %190 = vector.shape_cast %189 : vector<16x16xf32> to vector<2x8x16xf32>
    %191 = arith.truncf %190 : vector<2x8x16xf32> to vector<2x8x16xbf16>
    %192 = vector.extract_strided_slice %174 {offsets = [0, 80], sizes = [16, 16], strides = [1, 1]} : vector<16x96xf32> to vector<16x16xf32>
    %193 = vector.shape_cast %192 : vector<16x16xf32> to vector<2x8x16xf32>
    %194 = arith.truncf %193 : vector<2x8x16xf32> to vector<2x8x16xbf16>
    %195 = tpu.concatenate %191, %194 in 0 : vector<2x8x16xbf16>, vector<2x8x16xbf16> -> vector<4x8x16xbf16>
    "tpu.trace_start"() <{level = 10 : i32, message = "bqd,bkd->bqk"}> : () -> ()
    %cst_76 = arith.constant dense<0.000000e+00> : vector<4x8x8xf32>
    %196 = tpu.matmul %181, %188, %cst_76 {dimension_numbers = #tpu.dot_dimension_numbers<[2], [2], [1], [1], [0, 0, 0, 1, 1, 1], [0], [0]>} : vector<4x8x16xbf16>, vector<4x8x16xbf16>, vector<4x8x8xf32> -> vector<4x8x8xf32>
    "tpu.trace_stop"() : () -> ()
    %197 = arith.addf %196, %27 : vector<4x8x8xf32>
    %cst_77 = arith.constant dense<0xFF800000> : vector<4x8xf32>
    %198 = vector.multi_reduction <maximumf>, %197, %cst_77 [2] : vector<4x8x8xf32> to vector<4x8xf32>
    %199 = vector.shape_cast %198 : vector<4x8xf32> to vector<4x8x1xf32>
    %200 = vector.broadcast %199 : vector<4x8x1xf32> to vector<4x8x8xf32>
    %201 = arith.subf %197, %200 : vector<4x8x8xf32>
    %202 = math.exp %201 : vector<4x8x8xf32>
    %cst_78 = arith.constant dense<0.000000e+00> : vector<4x8xf32>
    %203 = vector.multi_reduction <add>, %202, %cst_78 [2] : vector<4x8x8xf32> to vector<4x8xf32>
    %204 = vector.shape_cast %203 : vector<4x8xf32> to vector<4x8x1xf32>
    %205 = tpu.reciprocal %204 {approx = true} : vector<4x8x1xf32> -> vector<4x8x1xf32>
    %206 = vector.broadcast %205 : vector<4x8x1xf32> to vector<4x8x8xf32>
    %207 = arith.mulf %202, %206 : vector<4x8x8xf32>
    %208 = arith.truncf %207 : vector<4x8x8xf32> to vector<4x8x8xbf16>
    "tpu.trace_start"() <{level = 10 : i32, message = "bqk,bkd->bqd"}> : () -> ()
    %cst_79 = arith.constant dense<0.000000e+00> : vector<4x8x16xf32>
    %209 = tpu.matmul %208, %195, %cst_79 {dimension_numbers = #tpu.dot_dimension_numbers<[2], [1], [1], [2], [0, 0, 0, 1, 1, 2], [0], [0]>} : vector<4x8x8xbf16>, vector<4x8x16xbf16>, vector<4x8x16xf32> -> vector<4x8x16xf32>
    "tpu.trace_stop"() : () -> ()
    %210 = vector.extract_strided_slice %209 {offsets = [0, 0, 0], sizes = [2, 8, 16], strides = [1, 1, 1]} : vector<4x8x16xf32> to vector<2x8x16xf32>
    %211 = vector.shape_cast %210 : vector<2x8x16xf32> to vector<16x16xf32>
    %212 = vector.extract_strided_slice %209 {offsets = [2, 0, 0], sizes = [2, 8, 16], strides = [1, 1, 1]} : vector<4x8x16xf32> to vector<2x8x16xf32>
    %213 = vector.shape_cast %212 : vector<2x8x16xf32> to vector<16x16xf32>
    %214 = tpu.concatenate %211, %213 in 1 : vector<16x16xf32>, vector<16x16xf32> -> vector<16x32xf32>
    %c1_80 = arith.constant 1 : index
    %c0_81 = arith.constant 0 : index
    %c0_82 = arith.constant 0 : index
    %215 = vector.load %arg7[%c1_80, %c0_81, %c0_82] : memref<2x32x32xbf16, #tpu.memory_space<vmem>>, vector<1x32x32xbf16>
    %216 = vector.shape_cast %215 : vector<1x32x32xbf16> to vector<32x32xbf16>
    %217 = arith.truncf %214 : vector<16x32xf32> to vector<16x32xbf16>
    %cst_83 = arith.constant dense<0.000000e+00> : vector<16x32xf32>
    %218 = tpu.matmul %217, %216, %cst_83 {dimension_numbers = #tpu.dot_dimension_numbers<[1], [0], [0], [1], [0, 0, 1, 1], [], []>} : vector<16x32xbf16>, vector<32x32xbf16>, vector<16x32xf32> -> vector<16x32xf32>
    %c1_84 = arith.constant 1 : index
    %c0_85 = arith.constant 0 : index
    %c0_86 = arith.constant 0 : index
    %219 = vector.load %arg8[%c1_84, %c0_85, %c0_86] : memref<2x1x32xf32, #tpu.memory_space<vmem>>, vector<1x1x32xf32>
    %220 = vector.shape_cast %219 : vector<1x1x32xf32> to vector<1x32xf32>
    %221 = vector.broadcast %220 : vector<1x32xf32> to vector<16x32xf32>
    %222 = arith.addf %218, %221 : vector<16x32xf32>
    %223 = arith.addf %166, %222 : vector<16x32xf32>
    %c1_87 = arith.constant 1 : index
    %c0_88 = arith.constant 0 : index
    %c0_89 = arith.constant 0 : index
    %224 = vector.load %arg9[%c1_87, %c0_88, %c0_89] : memref<2x1x32xf32, #tpu.memory_space<vmem>>, vector<1x1x32xf32>
    %225 = vector.shape_cast %224 : vector<1x1x32xf32> to vector<1x32xf32>
    %c1_90 = arith.constant 1 : index
    %c0_91 = arith.constant 0 : index
    %c0_92 = arith.constant 0 : index
    %226 = vector.load %arg10[%c1_90, %c0_91, %c0_92] : memref<2x1x32xf32, #tpu.memory_space<vmem>>, vector<1x1x32xf32>
    %227 = vector.shape_cast %226 : vector<1x1x32xf32> to vector<1x32xf32>
    %cst_93 = arith.constant dense<0.000000e+00> : vector<16xf32>
    %228 = vector.multi_reduction <add>, %223, %cst_93 [1] : vector<16x32xf32> to vector<16xf32>
    %229 = vector.shape_cast %228 : vector<16xf32> to vector<16x1xf32>
    %cst_94 = arith.constant 3.200000e+01 : f32
    %230 = vector.broadcast %cst_94 : f32 to vector<16x1xf32>
    %231 = arith.divf %229, %230 : vector<16x1xf32>
    %232 = vector.broadcast %231 : vector<16x1xf32> to vector<16x32xf32>
    %233 = arith.subf %223, %232 : vector<16x32xf32>
    %234 = arith.mulf %233, %233 : vector<16x32xf32>
    %cst_95 = arith.constant dense<0.000000e+00> : vector<16xf32>
    %235 = vector.multi_reduction <add>, %234, %cst_95 [1] : vector<16x32xf32> to vector<16xf32>
    %236 = vector.shape_cast %235 : vector<16xf32> to vector<16x1xf32>
    %cst_96 = arith.constant 3.200000e+01 : f32
    %237 = vector.broadcast %cst_96 : f32 to vector<16x1xf32>
    %238 = arith.divf %236, %237 : vector<16x1xf32>
    %239 = vector.broadcast %231 : vector<16x1xf32> to vector<16x32xf32>
    %240 = arith.subf %223, %239 : vector<16x32xf32>
    %cst_97 = arith.constant 9.99999996E-13 : f32
    %241 = vector.broadcast %cst_97 : f32 to vector<16x1xf32>
    %242 = arith.addf %238, %241 : vector<16x1xf32>
    %243 = math.rsqrt %242 : vector<16x1xf32>
    %244 = vector.broadcast %243 : vector<16x1xf32> to vector<16x32xf32>
    %245 = arith.mulf %240, %244 : vector<16x32xf32>
    %246 = vector.broadcast %225 : vector<1x32xf32> to vector<16x32xf32>
    %247 = arith.mulf %245, %246 : vector<16x32xf32>
    %248 = vector.broadcast %227 : vector<1x32xf32> to vector<16x32xf32>
    %249 = arith.addf %247, %248 : vector<16x32xf32>
    %c1_98 = arith.constant 1 : index
    %c0_99 = arith.constant 0 : index
    %c0_100 = arith.constant 0 : index
    %250 = vector.load %arg11[%c1_98, %c0_99, %c0_100] : memref<2x32x64xbf16, #tpu.memory_space<vmem>>, vector<1x32x64xbf16>
    %251 = vector.shape_cast %250 : vector<1x32x64xbf16> to vector<32x64xbf16>
    %252 = arith.truncf %249 : vector<16x32xf32> to vector<16x32xbf16>
    %cst_101 = arith.constant dense<0.000000e+00> : vector<16x64xf32>
    %253 = tpu.matmul %252, %251, %cst_101 {dimension_numbers = #tpu.dot_dimension_numbers<[1], [0], [0], [1], [0, 0, 1, 1], [], []>} : vector<16x32xbf16>, vector<32x64xbf16>, vector<16x64xf32> -> vector<16x64xf32>
    %c1_102 = arith.constant 1 : index
    %c0_103 = arith.constant 0 : index
    %c0_104 = arith.constant 0 : index
    %254 = vector.load %arg12[%c1_102, %c0_103, %c0_104] : memref<2x1x64xf32, #tpu.memory_space<vmem>>, vector<1x1x64xf32>
    %255 = vector.shape_cast %254 : vector<1x1x64xf32> to vector<1x64xf32>
    %256 = vector.broadcast %255 : vector<1x64xf32> to vector<16x64xf32>
    %257 = arith.addf %253, %256 : vector<16x64xf32>
    %258 = arith.mulf %257, %257 : vector<16x64xf32>
    %259 = arith.mulf %257, %258 : vector<16x64xf32>
    %cst_105 = arith.constant 4.471500e-02 : f32
    %260 = vector.broadcast %cst_105 : f32 to vector<16x64xf32>
    %261 = arith.mulf %260, %259 : vector<16x64xf32>
    %262 = arith.addf %257, %261 : vector<16x64xf32>
    %cst_106 = arith.constant 0.797884583 : f32
    %263 = vector.broadcast %cst_106 : f32 to vector<16x64xf32>
    %264 = arith.mulf %263, %262 : vector<16x64xf32>
    %265 = math.tanh %264 : vector<16x64xf32>
    %cst_107 = arith.constant 1.000000e+00 : f32
    %266 = vector.broadcast %cst_107 : f32 to vector<16x64xf32>
    %267 = arith.addf %266, %265 : vector<16x64xf32>
    %cst_108 = arith.constant 5.000000e-01 : f32
    %268 = vector.broadcast %cst_108 : f32 to vector<16x64xf32>
    %269 = arith.mulf %268, %267 : vector<16x64xf32>
    %270 = arith.mulf %257, %269 : vector<16x64xf32>
    %c1_109 = arith.constant 1 : index
    %c0_110 = arith.constant 0 : index
    %c0_111 = arith.constant 0 : index
    %271 = vector.load %arg13[%c1_109, %c0_110, %c0_111] : memref<2x64x32xbf16, #tpu.memory_space<vmem>>, vector<1x64x32xbf16>
    %272 = vector.shape_cast %271 : vector<1x64x32xbf16> to vector<64x32xbf16>
    %273 = arith.truncf %270 : vector<16x64xf32> to vector<16x64xbf16>
    %cst_112 = arith.constant dense<0.000000e+00> : vector<16x32xf32>
    %274 = tpu.matmul %273, %272, %cst_112 {dimension_numbers = #tpu.dot_dimension_numbers<[1], [0], [0], [1], [0, 0, 1, 1], [], []>} : vector<16x64xbf16>, vector<64x32xbf16>, vector<16x32xf32> -> vector<16x32xf32>
    %c1_113 = arith.constant 1 : index
    %c0_114 = arith.constant 0 : index
    %c0_115 = arith.constant 0 : index
    %275 = vector.load %arg14[%c1_113, %c0_114, %c0_115] : memref<2x1x32xf32, #tpu.memory_space<vmem>>, vector<1x1x32xf32>
    %276 = vector.shape_cast %275 : vector<1x1x32xf32> to vector<1x32xf32>
    %277 = vector.broadcast %276 : vector<1x32xf32> to vector<16x32xf32>
    %278 = arith.addf %274, %277 : vector<16x32xf32>
    %279 = arith.addf %249, %278 : vector<16x32xf32>
    %c1_116 = arith.constant 1 : index
    %c0_117 = arith.constant 0 : index
    %c0_118 = arith.constant 0 : index
    %280 = vector.load %arg15[%c1_116, %c0_117, %c0_118] : memref<2x1x32xf32, #tpu.memory_space<vmem>>, vector<1x1x32xf32>
    %281 = vector.shape_cast %280 : vector<1x1x32xf32> to vector<1x32xf32>
    %c1_119 = arith.constant 1 : index
    %c0_120 = arith.constant 0 : index
    %c0_121 = arith.constant 0 : index
    %282 = vector.load %arg16[%c1_119, %c0_120, %c0_121] : memref<2x1x32xf32, #tpu.memory_space<vmem>>, vector<1x1x32xf32>
    %283 = vector.shape_cast %282 : vector<1x1x32xf32> to vector<1x32xf32>
    %cst_122 = arith.constant dense<0.000000e+00> : vector<16xf32>
    %284 = vector.multi_reduction <add>, %279, %cst_122 [1] : vector<16x32xf32> to vector<16xf32>
    %285 = vector.shape_cast %284 : vector<16xf32> to vector<16x1xf32>
    %cst_123 = arith.constant 3.200000e+01 : f32
    %286 = vector.broadcast %cst_123 : f32 to vector<16x1xf32>
    %287 = arith.divf %285, %286 : vector<16x1xf32>
    %288 = vector.broadcast %287 : vector<16x1xf32> to vector<16x32xf32>
    %289 = arith.subf %279, %288 : vector<16x32xf32>
    %290 = arith.mulf %289, %289 : vector<16x32xf32>
    %cst_124 = arith.constant dense<0.000000e+00> : vector<16xf32>
    %291 = vector.multi_reduction <add>, %290, %cst_124 [1] : vector<16x32xf32> to vector<16xf32>
    %292 = vector.shape_cast %291 : vector<16xf32> to vector<16x1xf32>
    %cst_125 = arith.constant 3.200000e+01 : f32
    %293 = vector.broadcast %cst_125 : f32 to vector<16x1xf32>
    %294 = arith.divf %292, %293 : vector<16x1xf32>
    %295 = vector.broadcast %287 : vector<16x1xf32> to vector<16x32xf32>
    %296 = arith.subf %279, %295 : vector<16x32xf32>
    %cst_126 = arith.constant 9.99999996E-13 : f32
    %297 = vector.broadcast %cst_126 : f32 to vector<16x1xf32>
    %298 = arith.addf %294, %297 : vector<16x1xf32>
    %299 = math.rsqrt %298 : vector<16x1xf32>
    %300 = vector.broadcast %299 : vector<16x1xf32> to vector<16x32xf32>
    %301 = arith.mulf %296, %300 : vector<16x32xf32>
    %302 = vector.broadcast %281 : vector<1x32xf32> to vector<16x32xf32>
    %303 = arith.mulf %301, %302 : vector<16x32xf32>
    %304 = vector.broadcast %283 : vector<1x32xf32> to vector<16x32xf32>
    %305 = arith.addf %303, %304 : vector<16x32xf32>
    %c0_127 = arith.constant 0 : index
    %c0_128 = arith.constant 0 : index
    %306 = vector.load %arg1[%c0_127, %c0_128] : memref<16x1xf32, #tpu.memory_space<vmem>>, vector<16x1xf32>
    %307 = vector.broadcast %306 : vector<16x1xf32> to vector<16x32xf32>
    %308 = arith.mulf %305, %307 : vector<16x32xf32>
    %309 = vector.shape_cast %308 : vector<16x32xf32> to vector<2x8x32xf32>
    %cst_129 = arith.constant dense<0.000000e+00> : vector<2x32xf32>
    %310 = vector.multi_reduction <add>, %309, %cst_129 [1] : vector<2x8x32xf32> to vector<2x32xf32>
    %311 = vector.shape_cast %306 : vector<16x1xf32> to vector<2x8x1xf32>
    %cst_130 = arith.constant dense<0.000000e+00> : vector<2x1xf32>
    %312 = vector.multi_reduction <add>, %311, %cst_130 [1] : vector<2x8x1xf32> to vector<2x1xf32>
    %cst_131 = arith.constant 9.99999971E-10 : f32
    %313 = vector.broadcast %cst_131 : f32 to vector<2x1xf32>
    %314 = arith.maximumf %312, %313 : vector<2x1xf32>
    %315 = vector.broadcast %314 : vector<2x1xf32> to vector<2x32xf32>
    %316 = arith.divf %310, %315 : vector<2x32xf32>
    %c0_132 = arith.constant 0 : index
    %c0_133 = arith.constant 0 : index
    %317 = vector.load %arg17[%c0_132, %c0_133] : memref<2x32xf32, #tpu.memory_space<vmem>>, vector<2x32xf32>
    tpu.vector_store %arg17[%c0_132, %c0_133], %316 {strides = array<i32>} : memref<2x32xf32, #tpu.memory_space<vmem>>, vector<2x32xf32>,
    return
  }
}

</mosaic_0001>

<llo_original>
// kernel: _lambda_.1
$region0: #{_lambda_.1}
  #allocation0 [shape = 'u32[]', space=smem, size = 0x4, offset = 0x4, fixed_abs, tag = 'smem constant byte address 0x4 - core index']
  #allocation1 [shape = 'u32[72,128]{1,0:T(1,128)}', space=vmem, size = 0x9000, scoped, tag = 'internal scratch']
  %s0 = inlined_call_operand.vmem [shape: f32[16,32], index: 0, kind: input, shape index: {}]
  %s1 = inlined_call_operand.vmem [shape: f32[16,1], index: 1, kind: input, shape index: {}]
  %s2 = inlined_call_operand.vmem [shape: f32[4,1,8], index: 2, kind: input, shape index: {}]
  %s3 = inlined_call_operand.vmem [shape: f32[1,32], index: 3, kind: input, shape index: {}]
  %s4 = inlined_call_operand.vmem [shape: f32[1,32], index: 4, kind: input, shape index: {}]
  %s5 = inlined_call_operand.vmem [shape: bf16[2,32,96], index: 5, kind: input, shape index: {}]
  %s6 = inlined_call_operand.vmem [shape: f32[2,1,96], index: 6, kind: input, shape index: {}]
  %s7 = inlined_call_operand.vmem [shape: bf16[2,32,32], index: 7, kind: input, shape index: {}]
  %s8 = inlined_call_operand.vmem [shape: f32[2,1,32], index: 8, kind: input, shape index: {}]
  %s9 = inlined_call_operand.vmem [shape: f32[2,1,32], index: 9, kind: input, shape index: {}]
  %s10 = inlined_call_operand.vmem [shape: f32[2,1,32], index: 10, kind: input, shape index: {}]
  %s11 = inlined_call_operand.vmem [shape: bf16[2,32,64], index: 11, kind: input, shape index: {}]
  %s12 = inlined_call_operand.vmem [shape: f32[2,1,64], index: 12, kind: input, shape index: {}]
  %s13 = inlined_call_operand.vmem [shape: bf16[2,64,32], index: 13, kind: input, shape index: {}]
  %s14 = inlined_call_operand.vmem [shape: f32[2,1,32], index: 14, kind: input, shape index: {}]
  %s15 = inlined_call_operand.vmem [shape: f32[2,1,32], index: 15, kind: input, shape index: {}]
  %s16 = inlined_call_operand.vmem [shape: f32[2,1,32], index: 16, kind: input, shape index: {}]
  %s17 = inlined_call_operand.hbm [shape: f32[2,32], index: 17, kind: output, shape index: {}]
  %s18 = sld [smem:[#allocation0]]
  $region78: #{_lambda_.1} parent=0
    _
  %s20 = ssub.s32 1, %s18
  %s21 = scalar_select 0, %s20, %s18
  $region1: #{_lambda_.1} parent=0
    #allocation2 [shape = 'u8[1024]{0}', space=vmem, size = 0x400, scoped, tag = 'output window, operand 0, single buffered']
    #allocation3 [shape = 's32[1]{0}', space=sflag, size = 0x4, scoped, tag = 'scoped memory for _lambda_.1']
    %22 = vsyncpa [#allocation3], 0
    // Predicated region
    $region2: #{_lambda_.1} parent=1 // pred_check
      _
    $region3: #{_lambda_.1} parent=1 // pred_check_branch
      %24 = sbr.rel (0) target = $region5
    $region4: #{_lambda_.1} parent=1 // pred_region
      _
    $region5: #{_lambda_.1} parent=1 // pred_fallthru
      _
    // Predicated region
    $region6: #{_lambda_.1} parent=1 // pred_check
      _
    $region7: #{_lambda_.1} parent=1 // pred_check_branch
      %26 = sbr.rel (0) target = $region9
    $region8: #{_lambda_.1} parent=1 // pred_region
      _
    $region9: #{_lambda_.1} parent=1 // pred_fallthru
      _
    // Predicated region
    $region10: #{_lambda_.1} parent=1 // pred_check
      _
    $region11: #{_lambda_.1} parent=1 // pred_check_branch
      %28 = sbr.rel (0) target = $region13
    $region12: #{_lambda_.1} parent=1 // pred_region
      _
    $region13: #{_lambda_.1} parent=1 // pred_fallthru
      _
    // Predicated region
    $region14: #{_lambda_.1} parent=1 // pred_check
      _
    $region15: #{_lambda_.1} parent=1 // pred_check_branch
      %30 = sbr.rel (0) target = $region17
    $region16: #{_lambda_.1} parent=1 // pred_region
      _
    $region17: #{_lambda_.1} parent=1 // pred_fallthru
      _
    // Predicated region
    $region18: #{_lambda_.1} parent=1 // pred_check
      _
    $region19: #{_lambda_.1} parent=1 // pred_check_branch
      %32 = sbr.rel (0) target = $region21
    $region20: #{_lambda_.1} parent=1 // pred_region
      _
    $region21: #{_lambda_.1} parent=1 // pred_fallthru
      _
    // Predicated region
    $region22: #{_lambda_.1} parent=1 // pred_check
      _
    $region23: #{_lambda_.1} parent=1 // pred_check_branch
      %34 = sbr.rel (0) target = $region25
    $region24: #{_lambda_.1} parent=1 // pred_region
      _
    $region25: #{_lambda_.1} parent=1 // pred_fallthru
      _
    // Predicated region
    $region26: #{_lambda_.1} parent=1 // pred_check
      _
    $region27: #{_lambda_.1} parent=1 // pred_check_branch
      %36 = sbr.rel (0) target = $region29
    $region28: #{_lambda_.1} parent=1 // pred_region
      _
    $region29: #{_lambda_.1} parent=1 // pred_fallthru
      _
    // Predicated region
    $region30: #{_lambda_.1} parent=1 // pred_check
      _
    $region31: #{_lambda_.1} parent=1 // pred_check_branch
      %38 = sbr.rel (0) target = $region33
    $region32: #{_lambda_.1} parent=1 // pred_region
      _
    $region33: #{_lambda_.1} parent=1 // pred_fallthru
      _
    // Predicated region
    $region34: #{_lambda_.1} parent=1 // pred_check
      _
    $region35: #{_lambda_.1} parent=1 // pred_check_branch
      %40 = sbr.rel (0) target = $region37
    $region36: #{_lambda_.1} parent=1 // pred_region
      _
    $region37: #{_lambda_.1} parent=1 // pred_fallthru
      _
    // Predicated region
    $region38: #{_lambda_.1} parent=1 // pred_check
      _
    $region39: #{_lambda_.1} parent=1 // pred_check_branch
      %42 = sbr.rel (0) target = $region41
    $region40: #{_lambda_.1} parent=1 // pred_region
      _
    $region41: #{_lambda_.1} parent=1 // pred_fallthru
      _
    // Predicated region
    $region42: #{_lambda_.1} parent=1 // pred_check
      _
    $region43: #{_lambda_.1} parent=1 // pred_check_branch
      %44 = sbr.rel (0) target = $region45
    $region44: #{_lambda_.1} parent=1 // pred_region
      _
    $region45: #{_lambda_.1} parent=1 // pred_fallthru
      _
    // Predicated region
    $region46: #{_lambda_.1} parent=1 // pred_check
      _
    $region47: #{_lambda_.1} parent=1 // pred_check_branch
      %46 = sbr.rel (0) target = $region49
    $region48: #{_lambda_.1} parent=1 // pred_region
      _
    $region49: #{_lambda_.1} parent=1 // pred_fallthru
      _
    // Predicated region
    $region50: #{_lambda_.1} parent=1 // pred_check
      _
    $region51: #{_lambda_.1} parent=1 // pred_check_branch
      %48 = sbr.rel (0) target = $region53
    $region52: #{_lambda_.1} parent=1 // pred_region
      _
    $region53: #{_lambda_.1} parent=1 // pred_fallthru
      _
    // Predicated region
    $region54: #{_lambda_.1} parent=1 // pred_check
      _
    $region55: #{_lambda_.1} parent=1 // pred_check_branch
      %50 = sbr.rel (0) target = $region57
    $region56: #{_lambda_.1} parent=1 // pred_region
      _
    $region57: #{_lambda_.1} parent=1 // pred_fallthru
      _
    // Predicated region
    $region58: #{_lambda_.1} parent=1 // pred_check
      _
    $region59: #{_lambda_.1} parent=1 // pred_check_branch
      %52 = sbr.rel (0) target = $region61
    $region60: #{_lambda_.1} parent=1 // pred_region
      _
    $region61: #{_lambda_.1} parent=1 // pred_fallthru
      _
    // Predicated region
    $region62: #{_lambda_.1} parent=1 // pred_check
      _
    $region63: #{_lambda_.1} parent=1 // pred_check_branch
      %54 = sbr.rel (0) target = $region65
    $region64: #{_lambda_.1} parent=1 // pred_region
      _
    $region65: #{_lambda_.1} parent=1 // pred_fallthru
      _
    // Predicated region
    $region66: #{_lambda_.1} parent=1 // pred_check
      _
    $region67: #{_lambda_.1} parent=1 // pred_check_branch
      %56 = sbr.rel (0) target = $region69
    $region68: #{_lambda_.1} parent=1 // pred_region
      _
    $region69: #{_lambda_.1} parent=1 // pred_fallthru
      _
    %v58 = vld [vmem:[%s0] sm:$0xff]
    %v59 = vld [vmem:[%s0 + $0x8] sm:$0xff]
    %v60 = vld [vmem:[%s3] sm:$0x1]
    %v61 = vld [vmem:[%s4] sm:$0x1]
    %vm62 = vcmask 261120
    %v63 = vsel %vm62, %v58, 0.0
    %64 = vadd.xlane.f32.xlu0 %v63
    %v65 = vpop.xlane.xlu0 %64
    %v66 = vsel %vm62, %v59, 0.0
    %67 = vadd.xlane.f32.xlu0 %v66
    %v68 = vpop.xlane.xlu0 %67
    %v69 = vrcp.pop 32.0
    %v70 = vmul.f32 32.0, %v69
    %v71 = vsub.f32 1.0, %v70
    %v72 = vmul.f32 %v69, %v71
    %v73 = vadd.f32 %v69, %v72
    %vm74 = vweird.f32 %v69
    %v75 = vsel %vm74, %v69, %v73
    %v76 = vmul.f32 %v65, %v75
    %v77 = vmul.f32 %v68, %v75
    %v78 = vsub.f32 %v58, %v76
    %v79 = vsub.f32 %v59, %v77
    %v80 = vmul.f32 %v78, %v78
    %v81 = vmul.f32 %v79, %v79
    %v82 = vsel %vm62, %v80, 0.0
    %83 = vadd.xlane.f32.xlu0 %v82
    %v84 = vpop.xlane.xlu0 %83
    %v85 = vsel %vm62, %v81, 0.0
    %86 = vadd.xlane.f32.xlu0 %v85
    %v87 = vpop.xlane.xlu0 %86
    %v88 = vmul.f32 %v84, %v75
    %v89 = vmul.f32 %v87, %v75
    %v90 = vadd.f32 %v88, 1e-12
    %v91 = vadd.f32 %v89, 1e-12
    %v92 = vrsqrt.pop %v90
    %v93 = vmul.f32 %v92, %v90
    %v94 = vmul.f32 %v93, %v92
    %v95 = vmul.f32 0.5, %v94
    %v96 = vsub.f32 1.5, %v95
    %v97 = vmul.f32 %v92, %v96
    %vm98 = vweird.f32 %v90
    %vm99 = vweird.f32 %v92
    %vm100 = vmor %vm98, %vm99
    %v101 = vsel %vm100, %v92, %v97
    %v102 = vrsqrt.pop %v91
    %v103 = vmul.f32 %v102, %v91
    %v104 = vmul.f32 %v103, %v102
    %v105 = vmul.f32 0.5, %v104
    %v106 = vsub.f32 1.5, %v105
    %v107 = vmul.f32 %v102, %v106
    %vm108 = vweird.f32 %v91
    %vm109 = vweird.f32 %v102
    %vm110 = vmor %vm108, %vm109
    %v111 = vsel %vm110, %v102, %v107
    %v112 = vmul.f32 %v78, %v101
    %v113 = vmul.f32 %v79, %v111
    %v115 = vperm.slane %v60, 0
    %v117 = vmul.f32 %v112, %v115
    %v118 = vmul.f32 %v113, %v115
    %v120 = vperm.slane %v61, 0
    %v122 = vadd.f32 %v117, %v120
    %v123 = vadd.f32 %v118, %v120
    %v124 = vld [vmem:[%s2] sm:$0x1]
    %v125 = vld [vmem:[%s2 + $0x1] sm:$0x1]
    %v126 = vld [vmem:[%s2 + $0x2] sm:$0x1]
    %v127 = vld [vmem:[%s2 + $0x3] sm:$0x1]
    %v132 = vperm.slane %v124, 0
    %v133 = vperm.slane %v125, 0
    %v134 = vperm.slane %v126, 0
    %v135 = vperm.slane %v127, 0
    %v140 = vld [vmem:[%s5] sm:$0xf]
    %v141 = vld [vmem:[%s5 + $0x4] sm:$0xf]
    %v142 = vld [vmem:[%s5 + $0x8] sm:$0xf]
    %v143 = vld [vmem:[%s5 + $0xc] sm:$0xf]
    %v144 = vpack.c.bf16 %v123, %v122
    %v145 = vld [vmem:[%s6] sm:$0x1]
    %v147 = vperm.slane %v145, 0
    %v153 = vunpack.c.l.b16 %v140
    %v154 = vunpack.c.l.b16 %v141
    %v155 = vunpack.c.l.b16 %v142
    %v156 = vunpack.c.l.b16 %v143
    %v157 = vpack.c.b16 %v154, %v153
    %v158 = vpack.c.b16 %v156, %v155
    %v162 = vsel %vm62, %v144, 0
    %164 = vmatpush.bf16.msra.mxu0 0
    %165 = vmatpush.bf16.msra.mxu0 0
    %166 = vmatpush.bf16.msra.mxu0 0
    %167 = vmatpush.bf16.msra.mxu0 0
    %168 = vmatpush.bf16.msra.mxu0 0
    %169 = vmatpush.bf16.msra.mxu0 0
    %170 = vmatpush.bf16.msra.mxu0 %v158
    %171 = vmatpush.bf16.msra.mxu0 %v157
    %172 = vmatmul.bf16.gmra.mxu0 %v162
    %v173 = vpop.f32.mrf.mxu0
    %v174 = vadd.f32 %v147, %v173
    %v175 = vpop.f32.mrf.mxu0
    %v176 = vadd.f32 %v147, %v175
    %177 = vdwg.mxu0
    %v178 = vpack.c.bf16 %v174, %v174
    %v179 = vpack.c.bf16 %v176, %v176
    %182 = vrot.lane.b32.xlu0 %v178, 112
    %v183 = vpop.permute.xlu0 %182
    %184 = vrot.lane.b32.xlu0 %v179, 112
    %v185 = vpop.permute.xlu0 %184
    %v186 = vunpack.c.l.b16 %v178
    %v187 = vpack.c.b16 %v186, %v186
    %188 = vrot.lane.b32.xlu0 %v187, 96
    %v189 = vpop.permute.xlu0 %188
    %vm190 = vcmask 130048
    %v192 = vsel %vm190, %v178, 0
    %v195 = vsel %vm190, %v189, 0
    %197 = vmatpush.bf16.xpose.msra.mxu0 0
    %198 = vmatpush.bf16.xpose.msra.mxu0 0
    %199 = vmatpush.bf16.xpose.msra.mxu0 0
    %200 = vmatpush.bf16.xpose.msra.mxu0 0
    %201 = vmatpush.bf16.xpose.msra.mxu0 0
    %202 = vmatpush.bf16.xpose.msra.mxu0 0
    %203 = vmatpush.bf16.xpose.msra.mxu0 0
    %204 = vmatpush.bf16.xpose.msra.mxu0 %v195
    %205 = vmatmul.bf16.gmra.mxu0 %v192
    %v206 = vpop.f32.mrf.mxu0
    %v207 = vadd.f32 %v132, %v206
    %v208 = vpop.f32.mrf.mxu0
    %209 = vdwg.mxu0
    %v210 = vunpack.c.l.b16 %v179
    %v211 = vpack.c.b16 %v210, %v210
    %212 = vrot.lane.b32.xlu0 %v211, 96
    %v213 = vpop.permute.xlu0 %212
    %v215 = vsel %vm190, %v179, 0
    %v218 = vsel %vm190, %v213, 0
    %220 = vmatpush.bf16.xpose.msra.mxu0 0
    %221 = vmatpush.bf16.xpose.msra.mxu0 0
    %222 = vmatpush.bf16.xpose.msra.mxu0 0
    %223 = vmatpush.bf16.xpose.msra.mxu0 0
    %224 = vmatpush.bf16.xpose.msra.mxu0 0
    %225 = vmatpush.bf16.xpose.msra.mxu0 0
    %226 = vmatpush.bf16.xpose.msra.mxu0 0
    %227 = vmatpush.bf16.xpose.msra.mxu0 %v218
    %228 = vmatmul.bf16.gmra.mxu0 %v215
    %v229 = vpop.f32.mrf.mxu0
    %v230 = vadd.f32 %v133, %v229
    %v231 = vpop.f32.mrf.mxu0
    %232 = vdwg.mxu0
    %v233 = vunpack.c.l.b16 %v183
    %v234 = vpack.c.b16 %v233, %v233
    %235 = vrot.lane.b32.xlu0 %v234, 96
    %v236 = vpop.permute.xlu0 %235
    %v238 = vsel %vm190, %v183, 0
    %v241 = vsel %vm190, %v236, 0
    %243 = vmatpush.bf16.xpose.msra.mxu0 0
    %244 = vmatpush.bf16.xpose.msra.mxu0 0
    %245 = vmatpush.bf16.xpose.msra.mxu0 0
    %246 = vmatpush.bf16.xpose.msra.mxu0 0
    %247 = vmatpush.bf16.xpose.msra.mxu0 0
    %248 = vmatpush.bf16.xpose.msra.mxu0 0
    %249 = vmatpush.bf16.xpose.msra.mxu0 0
    %250 = vmatpush.bf16.xpose.msra.mxu0 %v241
    %251 = vmatmul.bf16.gmra.mxu0 %v238
    %v252 = vpop.f32.mrf.mxu0
    %v253 = vadd.f32 %v134, %v252
    %v254 = vpop.f32.mrf.mxu0
    %255 = vdwg.mxu0
    %v256 = vunpack.c.l.b16 %v185
    %v257 = vpack.c.b16 %v256, %v256
    %258 = vrot.lane.b32.xlu0 %v257, 96
    %v259 = vpop.permute.xlu0 %258
    %v261 = vsel %vm190, %v185, 0
    %v264 = vsel %vm190, %v259, 0
    %266 = vmatpush.bf16.xpose.msra.mxu0 0
    %267 = vmatpush.bf16.xpose.msra.mxu0 0
    %268 = vmatpush.bf16.xpose.msra.mxu0 0
    %269 = vmatpush.bf16.xpose.msra.mxu0 0
    %270 = vmatpush.bf16.xpose.msra.mxu0 0
    %271 = vmatpush.bf16.xpose.msra.mxu0 0
    %272 = vmatpush.bf16.xpose.msra.mxu0 0
    %273 = vmatpush.bf16.xpose.msra.mxu0 %v264
    %274 = vmatmul.bf16.gmra.mxu0 %v261
    %v275 = vpop.f32.mrf.mxu0
    %v276 = vadd.f32 %v135, %v275
    %v277 = vpop.f32.mrf.mxu0
    %278 = vdwg.mxu0
    %vm279 = vcmask 64512
    %v280 = vsel %vm279, %v207, -inf
    %281 = vmax.xlane.f32.xlu0 %v280
    %v282 = vpop.xlane.xlu0 %281
    %v283 = vsel %vm279, %v230, -inf
    %284 = vmax.xlane.f32.xlu0 %v283
    %v285 = vpop.xlane.xlu0 %284
    %v286 = vsel %vm279, %v253, -inf
    %287 = vmax.xlane.f32.xlu0 %v286
    %v288 = vpop.xlane.xlu0 %287
    %v289 = vsel %vm279, %v276, -inf
    %290 = vmax.xlane.f32.xlu0 %v289
    %v291 = vpop.xlane.xlu0 %290
    %v292 = vsub.f32 %v207, %v282
    %v293 = vsub.f32 %v230, %v285
    %v294 = vsub.f32 %v253, %v288
    %v295 = vsub.f32 %v276, %v291
    %v296 = vmul.f32 %v292, 1.442695
    %v297 = vpow.pop %v296
    %v298 = vmul.f32 %v293, 1.442695
    %v299 = vpow.pop %v298
    %v300 = vmul.f32 %v294, 1.442695
    %v301 = vpow.pop %v300
    %v302 = vmul.f32 %v295, 1.442695
    %v303 = vpow.pop %v302
    %v304 = vsel %vm279, %v297, 0.0
    %305 = vadd.xlane.f32.xlu0 %v304
    %v306 = vpop.xlane.xlu0 %305
    %v307 = vsel %vm279, %v299, 0.0
    %308 = vadd.xlane.f32.xlu0 %v307
    %v309 = vpop.xlane.xlu0 %308
    %v310 = vsel %vm279, %v301, 0.0
    %311 = vadd.xlane.f32.xlu0 %v310
    %v312 = vpop.xlane.xlu0 %311
    %v313 = vsel %vm279, %v303, 0.0
    %314 = vadd.xlane.f32.xlu0 %v313
    %v315 = vpop.xlane.xlu0 %314
    %v316 = vrcp.pop %v306
    %v317 = vrcp.pop %v309
    %v318 = vrcp.pop %v312
    %v319 = vrcp.pop %v315
    %v320 = vmul.f32 %v297, %v316
    %v321 = vmul.f32 %v299, %v317
    %v322 = vmul.f32 %v301, %v318
    %v323 = vmul.f32 %v303, %v319
    %v324 = vpack.c.bf16 %v320, %v320
    %v325 = vpack.c.bf16 %v321, %v321
    %v326 = vpack.c.bf16 %v322, %v322
    %v327 = vpack.c.bf16 %v323, %v323
    %328 = vrot.lane.b32.xlu0 %v187, 64
    %v329 = vpop.permute.xlu0 %328
    %v331 = vsel %vm279, %v324, 0
    %vm333 = vcmask 1043456
    %v335 = vsel %vm333, %v329, 0
    %337 = vmatpush.bf16.msra.mxu0 0
    %338 = vmatpush.bf16.msra.mxu0 0
    %339 = vmatpush.bf16.msra.mxu0 0
    %340 = vmatpush.bf16.msra.mxu0 0
    %341 = vmatpush.bf16.msra.mxu0 0
    %342 = vmatpush.bf16.msra.mxu0 0
    %343 = vmatpush.bf16.msra.mxu0 0
    %344 = vmatpush.bf16.msra.mxu0 %v335
    %345 = vmatmul.bf16.gmra.mxu0 %v331
    %v346 = vpop.f32.mrf.mxu0
    %v347 = vadd.f32 0.0, %v346
    %v348 = vpop.f32.mrf.mxu0
    %349 = vdwg.mxu0
    %350 = vrot.lane.b32.xlu0 %v211, 64
    %v351 = vpop.permute.xlu0 %350
    %v353 = vsel %vm279, %v325, 0
    %v356 = vsel %vm333, %v351, 0
    %358 = vmatpush.bf16.msra.mxu0 0
    %359 = vmatpush.bf16.msra.mxu0 0
    %360 = vmatpush.bf16.msra.mxu0 0
    %361 = vmatpush.bf16.msra.mxu0 0
    %362 = vmatpush.bf16.msra.mxu0 0
    %363 = vmatpush.bf16.msra.mxu0 0
    %364 = vmatpush.bf16.msra.mxu0 0
    %365 = vmatpush.bf16.msra.mxu0 %v356
    %366 = vmatmul.bf16.gmra.mxu0 %v353
    %v367 = vpop.f32.mrf.mxu0
    %v368 = vadd.f32 0.0, %v367
    %v369 = vpop.f32.mrf.mxu0
    %370 = vdwg.mxu0
    %371 = vrot.lane.b32.xlu0 %v234, 64
    %v372 = vpop.permute.xlu0 %371
    %v374 = vsel %vm279, %v326, 0
    %v377 = vsel %vm333, %v372, 0
    %379 = vmatpush.bf16.msra.mxu0 0
    %380 = vmatpush.bf16.msra.mxu0 0
    %381 = vmatpush.bf16.msra.mxu0 0
    %382 = vmatpush.bf16.msra.mxu0 0
    %383 = vmatpush.bf16.msra.mxu0 0
    %384 = vmatpush.bf16.msra.mxu0 0
    %385 = vmatpush.bf16.msra.mxu0 0
    %386 = vmatpush.bf16.msra.mxu0 %v377
    %387 = vmatmul.bf16.gmra.mxu0 %v374
    %v388 = vpop.f32.mrf.mxu0
    %v389 = vadd.f32 0.0, %v388
    %v390 = vpop.f32.mrf.mxu0
    %391 = vdwg.mxu0
    %392 = vrot.lane.b32.xlu0 %v257, 64
    %v393 = vpop.permute.xlu0 %392
    %v395 = vsel %vm279, %v327, 0
    %v398 = vsel %vm333, %v393, 0
    %400 = vmatpush.bf16.msra.mxu0 0
    %401 = vmatpush.bf16.msra.mxu0 0
    %402 = vmatpush.bf16.msra.mxu0 0
    %403 = vmatpush.bf16.msra.mxu0 0
    %404 = vmatpush.bf16.msra.mxu0 0
    %405 = vmatpush.bf16.msra.mxu0 0
    %406 = vmatpush.bf16.msra.mxu0 0
    %407 = vmatpush.bf16.msra.mxu0 %v398
    %408 = vmatmul.bf16.gmra.mxu0 %v395
    %v409 = vpop.f32.mrf.mxu0
    %v410 = vadd.f32 0.0, %v409
    %v411 = vpop.f32.mrf.mxu0
    %412 = vdwg.mxu0
    %415 = vrot.lane.b32.xlu0 %v389, 16
    %v416 = vpop.permute.xlu0 %415
    %417 = vrot.lane.b32.xlu0 %v410, 16
    %v418 = vpop.permute.xlu0 %417
    %v421 = vsel %vm190, %v347, %v416
    %v422 = vsel %vm190, %v368, %v418
    %v423 = vld [vmem:[%s7] sm:$0xf]
    %v424 = vld [vmem:[%s7 + $0x4] sm:$0xf]
    %v425 = vld [vmem:[%s7 + $0x8] sm:$0xf]
    %v426 = vld [vmem:[%s7 + $0xc] sm:$0xf]
    %v427 = vpack.c.bf16 %v422, %v421
    %v428 = vld [vmem:[%s8] sm:$0x1]
    %v430 = vperm.slane %v428, 0
    %v436 = vunpack.c.l.b16 %v423
    %v437 = vunpack.c.l.b16 %v424
    %v438 = vunpack.c.l.b16 %v425
    %v439 = vunpack.c.l.b16 %v426
    %v440 = vpack.c.b16 %v437, %v436
    %v441 = vpack.c.b16 %v439, %v438
    %v445 = vsel %vm62, %v427, 0
    %447 = vmatpush.bf16.msra.mxu0 0
    %448 = vmatpush.bf16.msra.mxu0 0
    %449 = vmatpush.bf16.msra.mxu0 0
    %450 = vmatpush.bf16.msra.mxu0 0
    %451 = vmatpush.bf16.msra.mxu0 0
    %452 = vmatpush.bf16.msra.mxu0 0
    %453 = vmatpush.bf16.msra.mxu0 %v441
    %454 = vmatpush.bf16.msra.mxu0 %v440
    %455 = vmatmul.bf16.gmra.mxu0 %v445
    %v456 = vpop.f32.mrf.mxu0
    %v457 = vadd.f32 %v430, %v456
    %v458 = vpop.f32.mrf.mxu0
    %v459 = vadd.f32 %v430, %v458
    %460 = vdwg.mxu0
    %v461 = vadd.f32 %v122, %v457
    %v462 = vadd.f32 %v123, %v459
    %v463 = vld [vmem:[%s9] sm:$0x1]
    %v464 = vld [vmem:[%s10] sm:$0x1]
    %v465 = vsel %vm62, %v461, 0.0
    %466 = vadd.xlane.f32.xlu0 %v465
    %v467 = vpop.xlane.xlu0 %466
    %v468 = vsel %vm62, %v462, 0.0
    %469 = vadd.xlane.f32.xlu0 %v468
    %v470 = vpop.xlane.xlu0 %469
    %v471 = vmul.f32 %v467, %v75
    %v472 = vmul.f32 %v470, %v75
    %v473 = vsub.f32 %v461, %v471
    %v474 = vsub.f32 %v462, %v472
    %v475 = vmul.f32 %v473, %v473
    %v476 = vmul.f32 %v474, %v474
    %v477 = vsel %vm62, %v475, 0.0
    %478 = vadd.xlane.f32.xlu0 %v477
    %v479 = vpop.xlane.xlu0 %478
    %v480 = vsel %vm62, %v476, 0.0
    %481 = vadd.xlane.f32.xlu0 %v480
    %v482 = vpop.xlane.xlu0 %481
    %v483 = vmul.f32 %v479, %v75
    %v484 = vmul.f32 %v482, %v75
    %v485 = vadd.f32 %v483, 1e-12
    %v486 = vadd.f32 %v484, 1e-12
    %v487 = vrsqrt.pop %v485
    %v488 = vmul.f32 %v487, %v485
    %v489 = vmul.f32 %v488, %v487
    %v490 = vmul.f32 0.5, %v489
    %v491 = vsub.f32 1.5, %v490
    %v492 = vmul.f32 %v487, %v491
    %vm493 = vweird.f32 %v485
    %vm494 = vweird.f32 %v487
    %vm495 = vmor %vm493, %vm494
    %v496 = vsel %vm495, %v487, %v492
    %v497 = vrsqrt.pop %v486
    %v498 = vmul.f32 %v497, %v486
    %v499 = vmul.f32 %v498, %v497
    %v500 = vmul.f32 0.5, %v499
    %v501 = vsub.f32 1.5, %v500
    %v502 = vmul.f32 %v497, %v501
    %vm503 = vweird.f32 %v486
    %vm504 = vweird.f32 %v497
    %vm505 = vmor %vm503, %vm504
    %v506 = vsel %vm505, %v497, %v502
    %v507 = vmul.f32 %v473, %v496
    %v508 = vmul.f32 %v474, %v506
    %v510 = vperm.slane %v463, 0
    %v512 = vmul.f32 %v507, %v510
    %v513 = vmul.f32 %v508, %v510
    %v515 = vperm.slane %v464, 0
    %v517 = vadd.f32 %v512, %v515
    %v518 = vadd.f32 %v513, %v515
    %v519 = vld [vmem:[%s11] sm:$0xf]
    %v520 = vld [vmem:[%s11 + $0x4] sm:$0xf]
    %v521 = vld [vmem:[%s11 + $0x8] sm:$0xf]
    %v522 = vld [vmem:[%s11 + $0xc] sm:$0xf]
    %v523 = vpack.c.bf16 %v518, %v517
    %v524 = vld [vmem:[%s12] sm:$0x1]
    %v526 = vperm.slane %v524, 0
    %v532 = vunpack.c.l.b16 %v519
    %v533 = vunpack.c.l.b16 %v520
    %v534 = vunpack.c.l.b16 %v521
    %v535 = vunpack.c.l.b16 %v522
    %v536 = vpack.c.b16 %v533, %v532
    %v537 = vpack.c.b16 %v535, %v534
    %v541 = vsel %vm62, %v523, 0
    %543 = vmatpush.bf16.msra.mxu0 0
    %544 = vmatpush.bf16.msra.mxu0 0
    %545 = vmatpush.bf16.msra.mxu0 0
    %546 = vmatpush.bf16.msra.mxu0 0
    %547 = vmatpush.bf16.msra.mxu0 0
    %548 = vmatpush.bf16.msra.mxu0 0
    %549 = vmatpush.bf16.msra.mxu0 %v537
    %550 = vmatpush.bf16.msra.mxu0 %v536
    %551 = vmatmul.bf16.gmra.mxu0 %v541
    %v552 = vpop.f32.mrf.mxu0
    %v553 = vadd.f32 %v526, %v552
    %v554 = vpop.f32.mrf.mxu0
    %v555 = vadd.f32 %v526, %v554
    %556 = vdwg.mxu0
    %v557 = vmul.f32 %v553, %v553
    %v558 = vmul.f32 %v555, %v555
    %v559 = vmul.f32 %v553, %v557
    %v560 = vmul.f32 %v555, %v558
    %v561 = vmul.f32 %v559, 0.044715
    %v562 = vmul.f32 %v560, 0.044715
    %v563 = vadd.f32 %v553, %v561
    %v564 = vadd.f32 %v555, %v562
    %v565 = vmul.f32 %v563, 0.7978846
    %v566 = vmul.f32 %v564, 0.7978846
    %v567 = vtanh.pop %v565
    %v568 = vtanh.pop %v566
    %v569 = vadd.f32 %v567, 1.0
    %v570 = vadd.f32 %v568, 1.0
    %v571 = vmul.f32 %v569, 0.5
    %v572 = vmul.f32 %v570, 0.5
    %v573 = vmul.f32 %v553, %v571
    %v574 = vmul.f32 %v555, %v572
    %v575 = vld [vmem:[%s13] sm:$0xf]
    %v576 = vld [vmem:[%s13 + $0x4] sm:$0xf]
    %v577 = vld [vmem:[%s13 + $0x8] sm:$0xf]
    %v578 = vld [vmem:[%s13 + $0xc] sm:$0xf]
    %v579 = vld [vmem:[%s13 + $0x10] sm:$0xf]
    %v580 = vld [vmem:[%s13 + $0x14] sm:$0xf]
    %v581 = vld [vmem:[%s13 + $0x18] sm:$0xf]
    %v582 = vld [vmem:[%s13 + $0x1c] sm:$0xf]
    %v583 = vpack.c.bf16 %v574, %v573
    %v584 = vld [vmem:[%s14] sm:$0x1]
    %v586 = vperm.slane %v584, 0
    %v596 = vunpack.c.l.b16 %v575
    %v597 = vunpack.c.l.b16 %v576
    %v598 = vunpack.c.l.b16 %v577
    %v599 = vunpack.c.l.b16 %v578
    %v600 = vunpack.c.l.b16 %v579
    %v601 = vunpack.c.l.b16 %v580
    %v602 = vunpack.c.l.b16 %v581
    %v603 = vunpack.c.l.b16 %v582
    %v604 = vpack.c.b16 %v597, %v596
    %v605 = vpack.c.b16 %v599, %v598
    %v606 = vpack.c.b16 %v601, %v600
    %v607 = vpack.c.b16 %v603, %v602
    %vm612 = vcmask 523264
    %v614 = vsel %vm612, %v583, 0
    %616 = vmatpush.bf16.msra.mxu0 0
    %617 = vmatpush.bf16.msra.mxu0 0
    %618 = vmatpush.bf16.msra.mxu0 0
    %619 = vmatpush.bf16.msra.mxu0 0
    %620 = vmatpush.bf16.msra.mxu0 %v607
    %621 = vmatpush.bf16.msra.mxu0 %v606
    %622 = vmatpush.bf16.msra.mxu0 %v605
    %623 = vmatpush.bf16.msra.mxu0 %v604
    %624 = vmatmul.bf16.gmra.mxu0 %v614
    %v625 = vpop.f32.mrf.mxu0
    %v626 = vadd.f32 %v586, %v625
    %v627 = vpop.f32.mrf.mxu0
    %v628 = vadd.f32 %v586, %v627
    %629 = vdwg.mxu0
    %v630 = vadd.f32 %v517, %v626
    %v631 = vadd.f32 %v518, %v628
    %v632 = vld [vmem:[%s15] sm:$0x1]
    %v633 = vld [vmem:[%s16] sm:$0x1]
    %v634 = vsel %vm62, %v630, 0.0
    %635 = vadd.xlane.f32.xlu0 %v634
    %v636 = vpop.xlane.xlu0 %635
    %v637 = vsel %vm62, %v631, 0.0
    %638 = vadd.xlane.f32.xlu0 %v637
    %v639 = vpop.xlane.xlu0 %638
    %v640 = vmul.f32 %v636, %v75
    %v641 = vmul.f32 %v639, %v75
    %v642 = vsub.f32 %v630, %v640
    %v643 = vsub.f32 %v631, %v641
    %v644 = vmul.f32 %v642, %v642
    %v645 = vmul.f32 %v643, %v643
    %v646 = vsel %vm62, %v644, 0.0
    %647 = vadd.xlane.f32.xlu0 %v646
    %v648 = vpop.xlane.xlu0 %647
    %v649 = vsel %vm62, %v645, 0.0
    %650 = vadd.xlane.f32.xlu0 %v649
    %v651 = vpop.xlane.xlu0 %650
    %v652 = vmul.f32 %v648, %v75
    %v653 = vmul.f32 %v651, %v75
    %v654 = vadd.f32 %v652, 1e-12
    %v655 = vadd.f32 %v653, 1e-12
    %v656 = vrsqrt.pop %v654
    %v657 = vmul.f32 %v656, %v654
    %v658 = vmul.f32 %v657, %v656
    %v659 = vmul.f32 0.5, %v658
    %v660 = vsub.f32 1.5, %v659
    %v661 = vmul.f32 %v656, %v660
    %vm662 = vweird.f32 %v654
    %vm663 = vweird.f32 %v656
    %vm664 = vmor %vm662, %vm663
    %v665 = vsel %vm664, %v656, %v661
    %v666 = vrsqrt.pop %v655
    %v667 = vmul.f32 %v666, %v655
    %v668 = vmul.f32 %v667, %v666
    %v669 = vmul.f32 0.5, %v668
    %v670 = vsub.f32 1.5, %v669
    %v671 = vmul.f32 %v666, %v670
    %vm672 = vweird.f32 %v655
    %vm673 = vweird.f32 %v666
    %vm674 = vmor %vm672, %vm673
    %v675 = vsel %vm674, %v666, %v671
    %v676 = vmul.f32 %v642, %v665
    %v677 = vmul.f32 %v643, %v675
    %v679 = vperm.slane %v632, 0
    %v681 = vmul.f32 %v676, %v679
    %v682 = vmul.f32 %v677, %v679
    %v684 = vperm.slane %v633, 0
    %v686 = vadd.f32 %v681, %v684
    %v687 = vadd.f32 %v682, %v684
    %s688 = scalar_lea.vmem %s5, 16
    %v689 = vld [vmem:[%s688] sm:$0xf]
    %v690 = vld [vmem:[%s688 + $0x4] sm:$0xf]
    %v691 = vld [vmem:[%s688 + $0x8] sm:$0xf]
    %v692 = vld [vmem:[%s688 + $0xc] sm:$0xf]
    %v693 = vpack.c.bf16 %v687, %v686
    %s694 = scalar_lea.vmem %s6, 1
    %v695 = vld [vmem:[%s694] sm:$0x1]
    %v697 = vperm.slane %v695, 0
    %v703 = vunpack.c.l.b16 %v689
    %v704 = vunpack.c.l.b16 %v690
    %v705 = vunpack.c.l.b16 %v691
    %v706 = vunpack.c.l.b16 %v692
    %v707 = vpack.c.b16 %v704, %v703
    %v708 = vpack.c.b16 %v706, %v705
    %v712 = vsel %vm62, %v693, 0
    %714 = vmatpush.bf16.msra.mxu0 0
    %715 = vmatpush.bf16.msra.mxu0 0
    %716 = vmatpush.bf16.msra.mxu0 0
    %717 = vmatpush.bf16.msra.mxu0 0
    %718 = vmatpush.bf16.msra.mxu0 0
    %719 = vmatpush.bf16.msra.mxu0 0
    %720 = vmatpush.bf16.msra.mxu0 %v708
    %721 = vmatpush.bf16.msra.mxu0 %v707
    %722 = vmatmul.bf16.gmra.mxu0 %v712
    %v723 = vpop.f32.mrf.mxu0
    %v724 = vadd.f32 %v697, %v723
    %v725 = vpop.f32.mrf.mxu0
    %v726 = vadd.f32 %v697, %v725
    %727 = vdwg.mxu0
    %v728 = vpack.c.bf16 %v724, %v724
    %v729 = vpack.c.bf16 %v726, %v726
    %732 = vrot.lane.b32.xlu0 %v728, 112
    %v733 = vpop.permute.xlu0 %732
    %734 = vrot.lane.b32.xlu0 %v729, 112
    %v735 = vpop.permute.xlu0 %734
    %v736 = vunpack.c.l.b16 %v728
    %v737 = vpack.c.b16 %v736, %v736
    %738 = vrot.lane.b32.xlu0 %v737, 96
    %v739 = vpop.permute.xlu0 %738
    %v741 = vsel %vm190, %v728, 0
    %v744 = vsel %vm190, %v739, 0
    %746 = vmatpush.bf16.xpose.msra.mxu0 0
    %747 = vmatpush.bf16.xpose.msra.mxu0 0
    %748 = vmatpush.bf16.xpose.msra.mxu0 0
    %749 = vmatpush.bf16.xpose.msra.mxu0 0
    %750 = vmatpush.bf16.xpose.msra.mxu0 0
    %751 = vmatpush.bf16.xpose.msra.mxu0 0
    %752 = vmatpush.bf16.xpose.msra.mxu0 0
    %753 = vmatpush.bf16.xpose.msra.mxu0 %v744
    %754 = vmatmul.bf16.gmra.mxu0 %v741
    %v755 = vpop.f32.mrf.mxu0
    %v756 = vadd.f32 %v132, %v755
    %v757 = vpop.f32.mrf.mxu0
    %758 = vdwg.mxu0
    %v759 = vunpack.c.l.b16 %v729
    %v760 = vpack.c.b16 %v759, %v759
    %761 = vrot.lane.b32.xlu0 %v760, 96
    %v762 = vpop.permute.xlu0 %761
    %v764 = vsel %vm190, %v729, 0
    %v767 = vsel %vm190, %v762, 0
    %769 = vmatpush.bf16.xpose.msra.mxu0 0
    %770 = vmatpush.bf16.xpose.msra.mxu0 0
    %771 = vmatpush.bf16.xpose.msra.mxu0 0
    %772 = vmatpush.bf16.xpose.msra.mxu0 0
    %773 = vmatpush.bf16.xpose.msra.mxu0 0
    %774 = vmatpush.bf16.xpose.msra.mxu0 0
    %775 = vmatpush.bf16.xpose.msra.mxu0 0
    %776 = vmatpush.bf16.xpose.msra.mxu0 %v767
    %777 = vmatmul.bf16.gmra.mxu0 %v764
    %v778 = vpop.f32.mrf.mxu0
    %v779 = vadd.f32 %v133, %v778
    %v780 = vpop.f32.mrf.mxu0
    %781 = vdwg.mxu0
    %v782 = vunpack.c.l.b16 %v733
    %v783 = vpack.c.b16 %v782, %v782
    %784 = vrot.lane.b32.xlu0 %v783, 96
    %v785 = vpop.permute.xlu0 %784
    %v787 = vsel %vm190, %v733, 0
    %v790 = vsel %vm190, %v785, 0
    %792 = vmatpush.bf16.xpose.msra.mxu0 0
    %793 = vmatpush.bf16.xpose.msra.mxu0 0
    %794 = vmatpush.bf16.xpose.msra.mxu0 0
    %795 = vmatpush.bf16.xpose.msra.mxu0 0
    %796 = vmatpush.bf16.xpose.msra.mxu0 0
    %797 = vmatpush.bf16.xpose.msra.mxu0 0
    %798 = vmatpush.bf16.xpose.msra.mxu0 0
    %799 = vmatpush.bf16.xpose.msra.mxu0 %v790
    %800 = vmatmul.bf16.gmra.mxu0 %v787
    %v801 = vpop.f32.mrf.mxu0
    %v802 = vadd.f32 %v134, %v801
    %v803 = vpop.f32.mrf.mxu0
    %804 = vdwg.mxu0
    %v805 = vunpack.c.l.b16 %v735
    %v806 = vpack.c.b16 %v805, %v805
    %807 = vrot.lane.b32.xlu0 %v806, 96
    %v808 = vpop.permute.xlu0 %807
    %v810 = vsel %vm190, %v735, 0
    %v813 = vsel %vm190, %v808, 0
    %815 = vmatpush.bf16.xpose.msra.mxu0 0
    %816 = vmatpush.bf16.xpose.msra.mxu0 0
    %817 = vmatpush.bf16.xpose.msra.mxu0 0
    %818 = vmatpush.bf16.xpose.msra.mxu0 0
    %819 = vmatpush.bf16.xpose.msra.mxu0 0
    %820 = vmatpush.bf16.xpose.msra.mxu0 0
    %821 = vmatpush.bf16.xpose.msra.mxu0 0
    %822 = vmatpush.bf16.xpose.msra.mxu0 %v813
    %823 = vmatmul.bf16.gmra.mxu0 %v810
    %v824 = vpop.f32.mrf.mxu0
    %v825 = vadd.f32 %v135, %v824
    %v826 = vpop.f32.mrf.mxu0
    %827 = vdwg.mxu0
    %v828 = vsel %vm279, %v756, -inf
    %829 = vmax.xlane.f32.xlu0 %v828
    %v830 = vpop.xlane.xlu0 %829
    %v831 = vsel %vm279, %v779, -inf
    %832 = vmax.xlane.f32.xlu0 %v831
    %v833 = vpop.xlane.xlu0 %832
    %v834 = vsel %vm279, %v802, -inf
    %835 = vmax.xlane.f32.xlu0 %v834
    %v836 = vpop.xlane.xlu0 %835
    %v837 = vsel %vm279, %v825, -inf
    %838 = vmax.xlane.f32.xlu0 %v837
    %v839 = vpop.xlane.xlu0 %838
    %v840 = vsub.f32 %v756, %v830
    %v841 = vsub.f32 %v779, %v833
    %v842 = vsub.f32 %v802, %v836
    %v843 = vsub.f32 %v825, %v839
    %v844 = vmul.f32 %v840, 1.442695
    %v845 = vpow.pop %v844
    %v846 = vmul.f32 %v841, 1.442695
    %v847 = vpow.pop %v846
    %v848 = vmul.f32 %v842, 1.442695
    %v849 = vpow.pop %v848
    %v850 = vmul.f32 %v843, 1.442695
    %v851 = vpow.pop %v850
    %v852 = vsel %vm279, %v845, 0.0
    %853 = vadd.xlane.f32.xlu0 %v852
    %v854 = vpop.xlane.xlu0 %853
    %v855 = vsel %vm279, %v847, 0.0
    %856 = vadd.xlane.f32.xlu0 %v855
    %v857 = vpop.xlane.xlu0 %856
    %v858 = vsel %vm279, %v849, 0.0
    %859 = vadd.xlane.f32.xlu0 %v858
    %v860 = vpop.xlane.xlu0 %859
    %v861 = vsel %vm279, %v851, 0.0
    %862 = vadd.xlane.f32.xlu0 %v861
    %v863 = vpop.xlane.xlu0 %862
    %v864 = vrcp.pop %v854
    %v865 = vrcp.pop %v857
    %v866 = vrcp.pop %v860
    %v867 = vrcp.pop %v863
    %v868 = vmul.f32 %v845, %v864
    %v869 = vmul.f32 %v847, %v865
    %v870 = vmul.f32 %v849, %v866
    %v871 = vmul.f32 %v851, %v867
    %v872 = vpack.c.bf16 %v868, %v868
    %v873 = vpack.c.bf16 %v869, %v869
    %v874 = vpack.c.bf16 %v870, %v870
    %v875 = vpack.c.bf16 %v871, %v871
    %876 = vrot.lane.b32.xlu0 %v737, 64
    %v877 = vpop.permute.xlu0 %876
    %v879 = vsel %vm279, %v872, 0
    %v882 = vsel %vm333, %v877, 0
    %884 = vmatpush.bf16.msra.mxu0 0
    %885 = vmatpush.bf16.msra.mxu0 0
    %886 = vmatpush.bf16.msra.mxu0 0
    %887 = vmatpush.bf16.msra.mxu0 0
    %888 = vmatpush.bf16.msra.mxu0 0
    %889 = vmatpush.bf16.msra.mxu0 0
    %890 = vmatpush.bf16.msra.mxu0 0
    %891 = vmatpush.bf16.msra.mxu0 %v882
    %892 = vmatmul.bf16.gmra.mxu0 %v879
    %v893 = vpop.f32.mrf.mxu0
    %v894 = vadd.f32 0.0, %v893
    %v895 = vpop.f32.mrf.mxu0
    %896 = vdwg.mxu0
    %897 = vrot.lane.b32.xlu0 %v760, 64
    %v898 = vpop.permute.xlu0 %897
    %v900 = vsel %vm279, %v873, 0
    %v903 = vsel %vm333, %v898, 0
    %905 = vmatpush.bf16.msra.mxu0 0
    %906 = vmatpush.bf16.msra.mxu0 0
    %907 = vmatpush.bf16.msra.mxu0 0
    %908 = vmatpush.bf16.msra.mxu0 0
    %909 = vmatpush.bf16.msra.mxu0 0
    %910 = vmatpush.bf16.msra.mxu0 0
    %911 = vmatpush.bf16.msra.mxu0 0
    %912 = vmatpush.bf16.msra.mxu0 %v903
    %913 = vmatmul.bf16.gmra.mxu0 %v900
    %v914 = vpop.f32.mrf.mxu0
    %v915 = vadd.f32 0.0, %v914
    %v916 = vpop.f32.mrf.mxu0
    %917 = vdwg.mxu0
    %918 = vrot.lane.b32.xlu0 %v783, 64
    %v919 = vpop.permute.xlu0 %918
    %v921 = vsel %vm279, %v874, 0
    %v924 = vsel %vm333, %v919, 0
    %926 = vmatpush.bf16.msra.mxu0 0
    %927 = vmatpush.bf16.msra.mxu0 0
    %928 = vmatpush.bf16.msra.mxu0 0
    %929 = vmatpush.bf16.msra.mxu0 0
    %930 = vmatpush.bf16.msra.mxu0 0
    %931 = vmatpush.bf16.msra.mxu0 0
    %932 = vmatpush.bf16.msra.mxu0 0
    %933 = vmatpush.bf16.msra.mxu0 %v924
    %934 = vmatmul.bf16.gmra.mxu0 %v921
    %v935 = vpop.f32.mrf.mxu0
    %v936 = vadd.f32 0.0, %v935
    %v937 = vpop.f32.mrf.mxu0
    %938 = vdwg.mxu0
    %939 = vrot.lane.b32.xlu0 %v806, 64
    %v940 = vpop.permute.xlu0 %939
    %v942 = vsel %vm279, %v875, 0
    %v945 = vsel %vm333, %v940, 0
    %947 = vmatpush.bf16.msra.mxu0 0
    %948 = vmatpush.bf16.msra.mxu0 0
    %949 = vmatpush.bf16.msra.mxu0 0
    %950 = vmatpush.bf16.msra.mxu0 0
    %951 = vmatpush.bf16.msra.mxu0 0
    %952 = vmatpush.bf16.msra.mxu0 0
    %953 = vmatpush.bf16.msra.mxu0 0
    %954 = vmatpush.bf16.msra.mxu0 %v945
    %955 = vmatmul.bf16.gmra.mxu0 %v942
    %v956 = vpop.f32.mrf.mxu0
    %v957 = vadd.f32 0.0, %v956
    %v958 = vpop.f32.mrf.mxu0
    %959 = vdwg.mxu0
    %962 = vrot.lane.b32.xlu0 %v936, 16
    %v963 = vpop.permute.xlu0 %962
    %964 = vrot.lane.b32.xlu0 %v957, 16
    %v965 = vpop.permute.xlu0 %964
    %v968 = vsel %vm190, %v894, %v963
    %v969 = vsel %vm190, %v915, %v965
    %s970 = scalar_lea.vmem %s7, 16
    %v971 = vld [vmem:[%s970] sm:$0xf]
    %v972 = vld [vmem:[%s970 + $0x4] sm:$0xf]
    %v973 = vld [vmem:[%s970 + $0x8] sm:$0xf]
    %v974 = vld [vmem:[%s970 + $0xc] sm:$0xf]
    %v975 = vpack.c.bf16 %v969, %v968
    %s976 = scalar_lea.vmem %s8, 1
    %v977 = vld [vmem:[%s976] sm:$0x1]
    %v979 = vperm.slane %v977, 0
    %v985 = vunpack.c.l.b16 %v971
    %v986 = vunpack.c.l.b16 %v972
    %v987 = vunpack.c.l.b16 %v973
    %v988 = vunpack.c.l.b16 %v974
    %v989 = vpack.c.b16 %v986, %v985
    %v990 = vpack.c.b16 %v988, %v987
    %v994 = vsel %vm62, %v975, 0
    %996 = vmatpush.bf16.msra.mxu0 0
    %997 = vmatpush.bf16.msra.mxu0 0
    %998 = vmatpush.bf16.msra.mxu0 0
    %999 = vmatpush.bf16.msra.mxu0 0
    %1000 = vmatpush.bf16.msra.mxu0 0
    %1001 = vmatpush.bf16.msra.mxu0 0
    %1002 = vmatpush.bf16.msra.mxu0 %v990
    %1003 = vmatpush.bf16.msra.mxu0 %v989
    %1004 = vmatmul.bf16.gmra.mxu0 %v994
    %v1005 = vpop.f32.mrf.mxu0
    %v1006 = vadd.f32 %v979, %v1005
    %v1007 = vpop.f32.mrf.mxu0
    %v1008 = vadd.f32 %v979, %v1007
    %1009 = vdwg.mxu0
    %v1010 = vadd.f32 %v686, %v1006
    %v1011 = vadd.f32 %v687, %v1008
    %s1012 = scalar_lea.vmem %s9, 1
    %v1013 = vld [vmem:[%s1012] sm:$0x1]
    %s1014 = scalar_lea.vmem %s10, 1
    %v1015 = vld [vmem:[%s1014] sm:$0x1]
    %v1016 = vsel %vm62, %v1010, 0.0
    %1017 = vadd.xlane.f32.xlu0 %v1016
    %v1018 = vpop.xlane.xlu0 %1017
    %v1019 = vsel %vm62, %v1011, 0.0
    %1020 = vadd.xlane.f32.xlu0 %v1019
    %v1021 = vpop.xlane.xlu0 %1020
    %v1022 = vmul.f32 %v1018, %v75
    %v1023 = vmul.f32 %v1021, %v75
    %v1024 = vsub.f32 %v1010, %v1022
    %v1025 = vsub.f32 %v1011, %v1023
    %v1026 = vmul.f32 %v1024, %v1024
    %v1027 = vmul.f32 %v1025, %v1025
    %v1028 = vsel %vm62, %v1026, 0.0
    %1029 = vadd.xlane.f32.xlu0 %v1028
    %v1030 = vpop.xlane.xlu0 %1029
    %v1031 = vsel %vm62, %v1027, 0.0
    %1032 = vadd.xlane.f32.xlu0 %v1031
    %v1033 = vpop.xlane.xlu0 %1032
    %v1034 = vmul.f32 %v1030, %v75
    %v1035 = vmul.f32 %v1033, %v75
    %v1036 = vadd.f32 %v1034, 1e-12
    %v1037 = vadd.f32 %v1035, 1e-12
    %v1038 = vrsqrt.pop %v1036
    %v1039 = vmul.f32 %v1038, %v1036
    %v1040 = vmul.f32 %v1039, %v1038
    %v1041 = vmul.f32 0.5, %v1040
    %v1042 = vsub.f32 1.5, %v1041
    %v1043 = vmul.f32 %v1038, %v1042
    %vm1044 = vweird.f32 %v1036
    %vm1045 = vweird.f32 %v1038
    %vm1046 = vmor %vm1044, %vm1045
    %v1047 = vsel %vm1046, %v1038, %v1043
    %v1048 = vrsqrt.pop %v1037
    %v1049 = vmul.f32 %v1048, %v1037
    %v1050 = vmul.f32 %v1049, %v1048
    %v1051 = vmul.f32 0.5, %v1050
    %v1052 = vsub.f32 1.5, %v1051
    %v1053 = vmul.f32 %v1048, %v1052
    %vm1054 = vweird.f32 %v1037
    %vm1055 = vweird.f32 %v1048
    %vm1056 = vmor %vm1054, %vm1055
    %v1057 = vsel %vm1056, %v1048, %v1053
    %v1058 = vmul.f32 %v1024, %v1047
    %v1059 = vmul.f32 %v1025, %v1057
    %v1061 = vperm.slane %v1013, 0
    %v1063 = vmul.f32 %v1058, %v1061
    %v1064 = vmul.f32 %v1059, %v1061
    %v1066 = vperm.slane %v1015, 0
    %v1068 = vadd.f32 %v1063, %v1066
    %v1069 = vadd.f32 %v1064, %v1066
    %s1070 = scalar_lea.vmem %s11, 16
    %v1071 = vld [vmem:[%s1070] sm:$0xf]
    %v1072 = vld [vmem:[%s1070 + $0x4] sm:$0xf]
    %v1073 = vld [vmem:[%s1070 + $0x8] sm:$0xf]
    %v1074 = vld [vmem:[%s1070 + $0xc] sm:$0xf]
    %v1075 = vpack.c.bf16 %v1069, %v1068
    %s1076 = scalar_lea.vmem %s12, 1
    %v1077 = vld [vmem:[%s1076] sm:$0x1]
    %v1079 = vperm.slane %v1077, 0
    %v1085 = vunpack.c.l.b16 %v1071
    %v1086 = vunpack.c.l.b16 %v1072
    %v1087 = vunpack.c.l.b16 %v1073
    %v1088 = vunpack.c.l.b16 %v1074
    %v1089 = vpack.c.b16 %v1086, %v1085
    %v1090 = vpack.c.b16 %v1088, %v1087
    %v1094 = vsel %vm62, %v1075, 0
    %1096 = vmatpush.bf16.msra.mxu0 0
    %1097 = vmatpush.bf16.msra.mxu0 0
    %1098 = vmatpush.bf16.msra.mxu0 0
    %1099 = vmatpush.bf16.msra.mxu0 0
    %1100 = vmatpush.bf16.msra.mxu0 0
    %1101 = vmatpush.bf16.msra.mxu0 0
    %1102 = vmatpush.bf16.msra.mxu0 %v1090
    %1103 = vmatpush.bf16.msra.mxu0 %v1089
    %1104 = vmatmul.bf16.gmra.mxu0 %v1094
    %v1105 = vpop.f32.mrf.mxu0
    %v1106 = vadd.f32 %v1079, %v1105
    %v1107 = vpop.f32.mrf.mxu0
    %v1108 = vadd.f32 %v1079, %v1107
    %1109 = vdwg.mxu0
    %v1110 = vmul.f32 %v1106, %v1106
    %v1111 = vmul.f32 %v1108, %v1108
    %v1112 = vmul.f32 %v1106, %v1110
    %v1113 = vmul.f32 %v1108, %v1111
    %v1114 = vmul.f32 %v1112, 0.044715
    %v1115 = vmul.f32 %v1113, 0.044715
    %v1116 = vadd.f32 %v1106, %v1114
    %v1117 = vadd.f32 %v1108, %v1115
    %v1118 = vmul.f32 %v1116, 0.7978846
    %v1119 = vmul.f32 %v1117, 0.7978846
    %v1120 = vtanh.pop %v1118
    %v1121 = vtanh.pop %v1119
    %v1122 = vadd.f32 %v1120, 1.0
    %v1123 = vadd.f32 %v1121, 1.0
    %v1124 = vmul.f32 %v1122, 0.5
    %v1125 = vmul.f32 %v1123, 0.5
    %v1126 = vmul.f32 %v1106, %v1124
    %v1127 = vmul.f32 %v1108, %v1125
    %s1128 = scalar_lea.vmem %s13, 32
    %v1129 = vld [vmem:[%s1128] sm:$0xf]
    %v1130 = vld [vmem:[%s1128 + $0x4] sm:$0xf]
    %v1131 = vld [vmem:[%s1128 + $0x8] sm:$0xf]
    %v1132 = vld [vmem:[%s1128 + $0xc] sm:$0xf]
    %v1133 = vld [vmem:[%s1128 + $0x10] sm:$0xf]
    %v1134 = vld [vmem:[%s1128 + $0x14] sm:$0xf]
    %v1135 = vld [vmem:[%s1128 + $0x18] sm:$0xf]
    %v1136 = vld [vmem:[%s1128 + $0x1c] sm:$0xf]
    %v1137 = vpack.c.bf16 %v1127, %v1126
    %s1138 = scalar_lea.vmem %s14, 1
    %v1139 = vld [vmem:[%s1138] sm:$0x1]
    %v1141 = vperm.slane %v1139, 0
    %v1151 = vunpack.c.l.b16 %v1129
    %v1152 = vunpack.c.l.b16 %v1130
    %v1153 = vunpack.c.l.b16 %v1131
    %v1154 = vunpack.c.l.b16 %v1132
    %v1155 = vunpack.c.l.b16 %v1133
    %v1156 = vunpack.c.l.b16 %v1134
    %v1157 = vunpack.c.l.b16 %v1135
    %v1158 = vunpack.c.l.b16 %v1136
    %v1159 = vpack.c.b16 %v1152, %v1151
    %v1160 = vpack.c.b16 %v1154, %v1153
    %v1161 = vpack.c.b16 %v1156, %v1155
    %v1162 = vpack.c.b16 %v1158, %v1157
    %v1168 = vsel %vm612, %v1137, 0
    %1170 = vmatpush.bf16.msra.mxu0 0
    %1171 = vmatpush.bf16.msra.mxu0 0
    %1172 = vmatpush.bf16.msra.mxu0 0
    %1173 = vmatpush.bf16.msra.mxu0 0
    %1174 = vmatpush.bf16.msra.mxu0 %v1162
    %1175 = vmatpush.bf16.msra.mxu0 %v1161
    %1176 = vmatpush.bf16.msra.mxu0 %v1160
    %1177 = vmatpush.bf16.msra.mxu0 %v1159
    %1178 = vmatmul.bf16.gmra.mxu0 %v1168
    %v1179 = vpop.f32.mrf.mxu0
    %v1180 = vadd.f32 %v1141, %v1179
    %v1181 = vpop.f32.mrf.mxu0
    %v1182 = vadd.f32 %v1141, %v1181
    %1183 = vdwg.mxu0
    %v1184 = vadd.f32 %v1068, %v1180
    %v1185 = vadd.f32 %v1069, %v1182
    %s1186 = scalar_lea.vmem %s15, 1
    %v1187 = vld [vmem:[%s1186] sm:$0x1]
    %s1188 = scalar_lea.vmem %s16, 1
    %v1189 = vld [vmem:[%s1188] sm:$0x1]
    %v1190 = vsel %vm62, %v1184, 0.0
    %1191 = vadd.xlane.f32.xlu0 %v1190
    %v1192 = vpop.xlane.xlu0 %1191
    %v1193 = vsel %vm62, %v1185, 0.0
    %1194 = vadd.xlane.f32.xlu0 %v1193
    %v1195 = vpop.xlane.xlu0 %1194
    %v1196 = vmul.f32 %v1192, %v75
    %v1197 = vmul.f32 %v1195, %v75
    %v1198 = vsub.f32 %v1184, %v1196
    %v1199 = vsub.f32 %v1185, %v1197
    %v1200 = vmul.f32 %v1198, %v1198
    %v1201 = vmul.f32 %v1199, %v1199
    %v1202 = vsel %vm62, %v1200, 0.0
    %1203 = vadd.xlane.f32.xlu0 %v1202
    %v1204 = vpop.xlane.xlu0 %1203
    %v1205 = vsel %vm62, %v1201, 0.0
    %1206 = vadd.xlane.f32.xlu0 %v1205
    %v1207 = vpop.xlane.xlu0 %1206
    %v1208 = vmul.f32 %v1204, %v75
    %v1209 = vmul.f32 %v1207, %v75
    %v1210 = vadd.f32 %v1208, 1e-12
    %v1211 = vadd.f32 %v1209, 1e-12
    %v1212 = vrsqrt.pop %v1210
    %v1213 = vmul.f32 %v1212, %v1210
    %v1214 = vmul.f32 %v1213, %v1212
    %v1215 = vmul.f32 0.5, %v1214
    %v1216 = vsub.f32 1.5, %v1215
    %v1217 = vmul.f32 %v1212, %v1216
    %vm1218 = vweird.f32 %v1210
    %vm1219 = vweird.f32 %v1212
    %vm1220 = vmor %vm1218, %vm1219
    %v1221 = vsel %vm1220, %v1212, %v1217
    %v1222 = vrsqrt.pop %v1211
    %v1223 = vmul.f32 %v1222, %v1211
    %v1224 = vmul.f32 %v1223, %v1222
    %v1225 = vmul.f32 0.5, %v1224
    %v1226 = vsub.f32 1.5, %v1225
    %v1227 = vmul.f32 %v1222, %v1226
    %vm1228 = vweird.f32 %v1211
    %vm1229 = vweird.f32 %v1222
    %vm1230 = vmor %vm1228, %vm1229
    %v1231 = vsel %vm1230, %v1222, %v1227
    %v1232 = vmul.f32 %v1198, %v1221
    %v1233 = vmul.f32 %v1199, %v1231
    %v1235 = vperm.slane %v1187, 0
    %v1237 = vmul.f32 %v1232, %v1235
    %v1238 = vmul.f32 %v1233, %v1235
    %v1240 = vperm.slane %v1189, 0
    %v1242 = vadd.f32 %v1237, %v1240
    %v1243 = vadd.f32 %v1238, %v1240
    %v1244 = vld [vmem:[%s1] sm:$0xff]
    %v1245 = vld [vmem:[%s1 + $0x8] sm:$0xff]
    %1247 = vset.pattern.permute.xlu0 0
    %1248 = vperm.xlu0 %1247, %v1244
    %v1249 = vpop.permute.xlu0 %1248
    %1252 = vset.pattern.permute.xlu0 0
    %1253 = vperm.xlu0 %1252, %v1245
    %v1254 = vpop.permute.xlu0 %1253
    %v1256 = vmul.f32 %v1242, %v1249
    %v1257 = vmul.f32 %v1243, %v1254
    %v1258 = vsel %vm62, %v1256, 0.0
    %v1259 = vrot.slane %v1258, 4
    %v1260 = vadd.f32 %v1258, %v1259
    %v1261 = vrot.slane %v1260, 2
    %v1262 = vadd.f32 %v1260, %v1261
    %v1263 = vrot.slane %v1262, 1
    %v1264 = vadd.f32 %v1262, %v1263
    %v1265 = vsel %vm62, %v1257, 0.0
    %v1266 = vrot.slane %v1265, 4
    %v1267 = vadd.f32 %v1265, %v1266
    %v1268 = vrot.slane %v1267, 2
    %v1269 = vadd.f32 %v1267, %v1268
    %v1270 = vrot.slane %v1269, 1
    %v1271 = vadd.f32 %v1269, %v1270
    %vm1272 = vcmask 7168
    %v1273 = vsel %vm1272, %v1244, 0.0
    %v1274 = vrot.slane %v1273, 4
    %v1275 = vadd.f32 %v1273, %v1274
    %v1276 = vrot.slane %v1275, 2
    %v1277 = vadd.f32 %v1275, %v1276
    %v1278 = vrot.slane %v1277, 1
    %v1279 = vadd.f32 %v1277, %v1278
    %v1280 = vsel %vm1272, %v1245, 0.0
    %v1281 = vrot.slane %v1280, 4
    %v1282 = vadd.f32 %v1280, %v1281
    %v1283 = vrot.slane %v1282, 2
    %v1284 = vadd.f32 %v1282, %v1283
    %v1285 = vrot.slane %v1284, 1
    %v1286 = vadd.f32 %v1284, %v1285
    %v1287 = vmax.f32 %v1279, 1e-09
    %v1288 = vmax.f32 %v1286, 1e-09
    %1290 = vset.pattern.permute.xlu0 0
    %1291 = vperm.xlu0 %1290, %v1287
    %v1292 = vpop.permute.xlu0 %1291
    %1295 = vset.pattern.permute.xlu0 0
    %1296 = vperm.xlu0 %1295, %v1288
    %v1297 = vpop.permute.xlu0 %1296
    %v1299 = vrcp.pop %v1292
    %v1300 = vmul.f32 %v1292, %v1299
    %v1301 = vsub.f32 1.0, %v1300
    %v1302 = vmul.f32 %v1299, %v1301
    %v1303 = vadd.f32 %v1299, %v1302
    %vm1304 = vweird.f32 %v1292
    %vm1305 = vweird.f32 %v1299
    %vm1306 = vmor %vm1304, %vm1305
    %v1307 = vsel %vm1306, %v1299, %v1303
    %v1308 = vand.u32 2147483647, %v1292
    %vm1309 = vcmp.eq.f32.partialorder %v1308, 8.507059e+37
    %v1310 = vand.u32 %v1292, 2147483648
    %v1311 = vor.u32 1.1754944e-38, %v1310
    %v1312 = vsel %vm1309, %v1311, %v1307
    %v1313 = vmul.f32 %v1264, %v1312
    %v1314 = vrcp.pop %v1297
    %v1315 = vmul.f32 %v1297, %v1314
    %v1316 = vsub.f32 1.0, %v1315
    %v1317 = vmul.f32 %v1314, %v1316
    %v1318 = vadd.f32 %v1314, %v1317
    %vm1319 = vweird.f32 %v1297
    %vm1320 = vweird.f32 %v1314
    %vm1321 = vmor %vm1319, %vm1320
    %v1322 = vsel %vm1321, %v1314, %v1318
    %v1323 = vand.u32 2147483647, %v1297
    %vm1324 = vcmp.eq.f32.partialorder %v1323, 8.507059e+37
    %v1325 = vand.u32 %v1297, 2147483648
    %v1326 = vor.u32 1.1754944e-38, %v1325
    %v1327 = vsel %vm1324, %v1326, %v1322
    %v1328 = vmul.f32 %v1271, %v1327
    %vm1331 = vcmask 1041409
    %v1332 = vsel %vm1331, %v1328, %v1313
    %vm1334 = vcmask 254976
    %1335 = vst.msk [vmem:[#allocation2] sm:$0x3] %vm1334, %v1332
    // Predicated region
    $region70: #{_lambda_.1} parent=1 // pred_check
      _
    $region71: #{_lambda_.1} parent=1 // pred_check_branch
      %1337 = sbr.rel (0) target = $region73
    $region72: #{_lambda_.1} parent=1 // pred_region
      %1339 = vsyncadd [#allocation3], 0
      %s1341 = sshll.u32 [#allocation2], 4
      %s1342 = int_to_ptr.vmem [resolvable:$true] %s1341
      %s1343 = sshll.u32 %s17, 4
      %s1344 = int_to_ptr.hbm [resolvable:$true] %s1343
      %1346 = dma.vmem_to_hbm [thread:$0]  %s1342, 32, %s1344, [#allocation3]
    $region73: #{_lambda_.1} parent=1 // pred_fallthru
      _
    // Predicated region
    $region74: #{_lambda_.1} parent=1 // pred_check
      _
    $region75: #{_lambda_.1} parent=1 // pred_check_branch
      %1348 = sbr.rel (0) target = $region77
    $region76: #{_lambda_.1} parent=1 // pred_region
      %1350 = dma.done [#allocation3], 32
    $region77: #{_lambda_.1} parent=1 // pred_fallthru
      _
    %1351 = vsyncpa [#allocation3], 1

</llo_original>
